<compile_context>
chip_gen: v7x
topology: tpu7x:2x2x1
jax: 0.10.0
libtpu: 0.0.40
codegen_flags: <defaults>
</compile_context>

<pallas_src>
import jax
import jax.numpy as jnp
import numpy as np
from jax.experimental import pallas as pl
from jax.experimental.pallas import tpu as pltpu


# ----------------------------------------------------------------------------
# Model dimensions (implied by the DrQ encoder / critic this wrapper wraps)
# ----------------------------------------------------------------------------
B = 2                                  # batch
C_IN, H_IN, W_IN = 4, 16, 16           # obs is NCHW [B, 4, 16, 16]
C1, K1, S1 = 32, 3, 2                  # conv1: 4 -> 32, k3, stride 2
C2, K2, S2 = 32, 3, 1                  # conv2: 32 -> 32, k3, stride 1
H1 = (H_IN - K1) // S1 + 1             # 7
W1 = (W_IN - K1) // S1 + 1             # 7
H2 = (H1 - K2) // S2 + 1               # 5
W2 = (W1 - K2) // S2 + 1               # 5
FEAT = 50                              # trunk Linear(800 -> 50) + LayerNorm + tanh
FEATP = 64                             # FEAT zero-padded to a lane-friendly 64
ACT = 6                                # action dim
HID = 64                               # critic hidden width
ROWS_PER_B = H1 + 1                    # 8 stacked rows per batch element


# ----------------------------------------------------------------------------
# Fused forward kernel: everything VMEM-resident, only [B,1] leaves the chip.
# ----------------------------------------------------------------------------
def _fused_forward_kernel(obs_ref, act_ref, m1_ref, m2_ref, tw_ref,
                          sm_ref, cw_ref, o_ref):
    f32 = jnp.float32
    nb = act_ref.shape[0]              # batch (static at trace time)
    nr = obs_ref.shape[1]              # nb * 8 batch-stacked rows
    ev = obs_ref[0]                    # [nr, 64] even input rows (H=0,2,...,14)
    od = obs_ref[1]                    # [nr, 64] odd  input rows (H=1,3,...,15)

    # conv1 (k=3, stride=2) + bias + ReLU as 3 batch-stacked Toeplitz matmuls
    # (weights bf16, accumulation f32).  Stacked row j = b*8 + oh; rows with
    # oh == 7 are junk and never reach a valid downstream row.
    c1a = jnp.dot(ev, m1_ref[0], preferred_element_type=f32)          # [nr,224]
    c1b = jnp.dot(od, m1_ref[1], preferred_element_type=f32)          # [nr,224]
    c1c = jnp.dot(ev[1:nr], m1_ref[2], preferred_element_type=f32)    # [nr-1,224]
    h1 = jnp.maximum(c1a[0:nr - 1] + c1b[0:nr - 1] + c1c
                     + sm_ref[0:1, 0:C1 * W1], 0.0)                   # [nr-1,224]

    # conv2 (k=3, stride=1) + bias + ReLU; valid at rows b*8 + (0..4).
    n2 = nr - 3
    c2a = jnp.dot(h1[0:n2], m2_ref[0], preferred_element_type=f32)
    c2b = jnp.dot(h1[1:n2 + 1], m2_ref[1], preferred_element_type=f32)
    c2c = jnp.dot(h1[2:n2 + 2], m2_ref[2], preferred_element_type=f32)
    h2 = jnp.maximum(c2a + c2b + c2c + sm_ref[1:2, 0:C2 * W2], 0.0)   # [n2,160]

    # trunk Linear(800 -> 50, padded to 64): the flatten over the 5 conv2 rows
    # becomes 5 shifted [9,160]@[160,64] dots, summed once (tree sum).
    tr = ROWS_PER_B * (nb - 1) + 1
    parts = [jnp.dot(h2[r:r + tr], tw_ref[r], preferred_element_type=f32)
             for r in range(H2)]                                      # 5x[tr,64]
    fsum = (parts[0] + parts[1]) + (parts[2] + parts[3]) + parts[4]

    # Per-batch feat rows live at stacked rows 0, 8, ...; gather + bias.
    feat = jnp.concatenate(
        [fsum[ROWS_PER_B * b:ROWS_PER_B * b + 1, :] for b in range(nb)],
        axis=0) + sm_ref[2:3, 0:FEATP]                                # [nb,64]

    # LayerNorm over the 50 real lanes (explicit 1/50 scale + lane mask), tanh.
    # Padded lanes of `ft` come out exactly 0 (gamma/beta pads are 0).
    mask = sm_ref[5:6, 0:FEATP]
    inv_n = 1.0 / FEAT
    mean = jnp.sum(feat, axis=-1, keepdims=True) * inv_n
    d = (feat - mean) * mask
    var = jnp.sum(d * d, axis=-1, keepdims=True) * inv_n
    ft = jnp.tanh(d * jax.lax.rsqrt(var + 1e-5) * sm_ref[3:4, 0:FEATP]
                  + sm_ref[4:5, 0:FEATP])                             # [nb,64]

    # critic Q1: concat([feat, action]) folded into lanes 50:56 of one dot.
    z = ft + act_ref[...]                                             # [nb,64]
    h = jnp.maximum(jnp.dot(z, cw_ref[0:FEATP, :], preferred_element_type=f32)
                    + sm_ref[6:7, 0:HID], 0.0)                        # [nb,64]
    h = jnp.maximum(jnp.dot(h, cw_ref[FEATP:FEATP + HID, :],
                            preferred_element_type=f32)
                    + sm_ref[7:8, 0:HID], 0.0)                        # [nb,64]
    q = (jnp.sum(h * sm_ref[8:9, 0:HID], axis=-1, keepdims=True)
         + sm_ref[9:10, 0:1])
    o_ref[...] = q.astype(o_ref.dtype)                                # [nb,1]


_VMEM = pl.BlockSpec(memory_space=pltpu.MemorySpace.VMEM)


@jax.jit
def model_wrapper_forward(prep, obs, action):
    """ModelWrapper.forward: critic(encoder(obs), action)[0]."""
    # TODO(synk): the `action is None` branch (state-only critic) is not
    # exercised here; only the action-conditioned Q1 path is implemented.
    assert obs.shape[1:] == (C_IN, H_IN, W_IN)
    batch = obs.shape[0]
    # NCHW -> channels-last rows [B, H, W*C]; split by H parity and batch-stack
    # so the stride-2 conv1 only needs contiguous sublane slices in-kernel.
    x = jnp.transpose(obs, (0, 2, 3, 1)).reshape(batch, H_IN, W_IN * C_IN)
    x = x.astype(jnp.float32)
    ev = x[:, 0::2, :].reshape(batch * ROWS_PER_B, W_IN * C_IN)
    od = x[:, 1::2, :].reshape(batch * ROWS_PER_B, W_IN * C_IN)
    obs_eo = jnp.stack([ev, od], axis=0)                 # [2, B*8, 64]
    # Place the action into the padded feat lanes [50:56] so the critic's
    # concat is a single aligned [B,64]@[64,64] dot in-kernel.
    act_pad = jnp.pad(action.astype(jnp.float32),
                      ((0, 0), (FEAT, FEATP - FEAT - ACT)))

    return pl.pallas_call(
        _fused_forward_kernel,
        out_shape=jax.ShapeDtypeStruct((batch, 1), jnp.float32),
        in_specs=[_VMEM] * 7,
        out_specs=_VMEM,
    )(obs_eo, act_pad, prep["m1"], prep["m2"], prep["tw"],
      prep["small"], prep["critw"])


# ----------------------------------------------------------------------------
# Parameters: raw (PyTorch layouts) + one-time prep into kernel layouts.
# ----------------------------------------------------------------------------
def init_params(key):
    """Synthetic params in PyTorch layouts ([Cout,Cin,kh,kw], NCHW flatten)."""
    ks = jax.random.split(key, 10)

    def w(k, shape, scale=0.1):
        return (scale * jax.random.normal(k, shape)).astype(jnp.float32)

    return {
        "conv1_w": w(ks[0], (C1, C_IN, K1, K1)),
        "conv1_b": w(ks[1], (C1,)),
        "conv2_w": w(ks[2], (C2, C1, K2, K2)),
        "conv2_b": w(ks[3], (C2,)),
        # trunk_w rows are in PyTorch NCHW flatten order (c, h, w).
        "trunk_w": w(ks[4], (C2 * H2 * W2, FEAT)),
        "trunk_b": w(ks[5], (FEAT,)),
        "ln_g": jnp.ones((FEAT,), jnp.float32),
        "ln_b": jnp.zeros((FEAT,), jnp.float32),
        "q1_w1": w(ks[6], (FEAT + ACT, HID)),
        "q1_b1": w(ks[7], (HID,)),
        "q1_w2": w(ks[8], (HID, HID)),
        "q1_b2": jnp.zeros((HID,), jnp.float32),
        "q1_w3": w(ks[9], (HID, 1)),
        "q1_b3": jnp.zeros((1,), jnp.float32),
    }


def _conv_as_toeplitz(w_oihw, w_in, w_out, stride):
    """Per-kernel-row matrices M[di] ([W_in*Cin, W_out*Cout]) such that, in the
    channels-last-rows layout (row=H, col=W*C), a VALID conv is
    out = sum_di  input_rows_at_vertical_offset(di) @ M[di]."""
    cout, cin, kh, kw = w_oihw.shape
    w_np = np.asarray(w_oihw, np.float32)
    m = np.zeros((kh, w_in * cin, w_out * cout), np.float32)
    for di in range(kh):
        for ow in range(w_out):
            for dj in range(kw):
                col = stride * ow + dj
                m[di, col * cin:(col + 1) * cin,
                  ow * cout:(ow + 1) * cout] = w_np[:, :, di, dj].T
    return m


def prepare_params(raw):
    """One-time layout prep: bf16 big weights, small params packed into two
    buffers, FEAT padded to 64 lanes."""
    m1 = _conv_as_toeplitz(raw["conv1_w"], W_IN, W1, S1)   # [3, 64, 224]
    m2 = _conv_as_toeplitz(raw["conv2_w"], W1, W2, S2)     # [3, 224, 160]

    # trunk_w rows: (c, h, w) PyTorch flatten -> [h, w*C2 + c, feat_padded].
    tw = np.asarray(raw["trunk_w"], np.float32)
    tw = tw.reshape(C2, H2, W2, FEAT).transpose(1, 2, 0, 3).reshape(
        H2, W2 * C2, FEAT)
    tw_pad = np.zeros((H2, W2 * C2, FEATP), np.float32)
    tw_pad[:, :, :FEAT] = tw

    # Small row-vector parameters packed into one [16, 256] f32 table.
    small = np.zeros((16, 256), np.float32)
    small[0, :C1 * W1] = np.tile(np.asarray(raw["conv1_b"], np.float32), W1)
    small[1, :C2 * W2] = np.tile(np.asarray(raw["conv2_b"], np.float32), W2)
    small[2, :FEAT] = np.asarray(raw["trunk_b"], np.float32)
    small[3, :FEAT] = np.asarray(raw["ln_g"], np.float32)      # gamma (pad = 0)
    small[4, :FEAT] = np.asarray(raw["ln_b"], np.float32)      # beta  (pad = 0)
    small[5, :FEAT] = 1.0                                      # LayerNorm mask
    small[6, :HID] = np.asarray(raw["q1_b1"], np.float32)
    small[7, :HID] = np.asarray(raw["q1_b2"], np.float32)
    small[8, :HID] = np.asarray(raw["q1_w3"], np.float32)[:, 0]
    small[9, 0] = float(np.asarray(raw["q1_b3"], np.float32)[0])

    # Critic matrices packed into one [128, 64] f32 slab:
    #   rows 0:56   = q1_w1 (feat rows 0:50, action rows 50:56), rows 56:64 = 0
    #   rows 64:128 = q1_w2
    critw = np.zeros((FEATP + HID, HID), np.float32)
    critw[:FEAT + ACT, :] = np.asarray(raw["q1_w1"], np.float32)
    critw[FEATP:FEATP + HID, :] = np.asarray(raw["q1_w2"], np.float32)

    return {
        "m1": jnp.asarray(m1, jnp.bfloat16),
        "m2": jnp.asarray(m2, jnp.bfloat16),
        "tw": jnp.asarray(tw_pad, jnp.bfloat16),
        "small": jnp.asarray(small, jnp.float32),
        "critw": jnp.asarray(critw, jnp.float32),
    }


# ----------------------------------------------------------------------------
# Plain-XLA reference (PyTorch conventions).  Big weights are rounded through
# bf16 exactly as the kernel stores them, so the comparison tolerance stays
# tight and would catch any Toeplitz / trunk re-indexing bug.
# ----------------------------------------------------------------------------
def reference_forward(p, obs, action):
    hp = jax.lax.Precision.HIGHEST
    bf = lambda a: a.astype(jnp.bfloat16).astype(jnp.float32)

    def conv(x, w, b, s):
        y = jax.lax.conv_general_dilated(
            x, w, window_strides=(s, s), padding="VALID",
            dimension_numbers=("NCHW", "OIHW", "NCHW"), precision=hp)
        return jnp.maximum(y + b[None, :, None, None], 0.0)

    h = conv(obs, bf(p["conv1_w"]), p["conv1_b"], S1)
    h = conv(h, bf(p["conv2_w"]), p["conv2_b"], S2)
    h = h.reshape(h.shape[0], -1)                       # NCHW flatten (c,h,w)
    h = jnp.dot(h, bf(p["trunk_w"]), precision=hp) + p["trunk_b"]
    mean = jnp.mean(h, axis=-1, keepdims=True)
    var = jnp.mean((h - mean) ** 2, axis=-1, keepdims=True)
    h = jnp.tanh((h - mean) * jax.lax.rsqrt(var + 1e-5) * p["ln_g"] + p["ln_b"])
    x = jnp.concatenate([h, action], axis=-1)
    x = jnp.maximum(jnp.dot(x, p["q1_w1"], precision=hp) + p["q1_b1"], 0.0)
    x = jnp.maximum(jnp.dot(x, p["q1_w2"], precision=hp) + p["q1_b2"], 0.0)
    return jnp.dot(x, p["q1_w3"], precision=hp) + p["q1_b3"]


if __name__ == "__main__":
    key = jax.random.PRNGKey(0)
    k_p, k_obs, k_act = jax.random.split(key, 3)

    raw_params = init_params(k_p)
    prep = prepare_params(raw_params)                 # one-time weight prep

    obs = jax.random.normal(k_obs, (B, C_IN, H_IN, W_IN), dtype=jnp.float32)
    action = jax.random.normal(k_act, (B, ACT), dtype=jnp.float32)

    q1 = model_wrapper_forward(prep, obs, action)
    jax.block_until_ready(q1)

    assert q1.shape == (B, 1) and bool(jnp.all(jnp.isfinite(q1)))
    q_ref = reference_forward(raw_params, obs, action)
    err = float(jnp.max(jnp.abs(q1 - q_ref)))
    assert err < 1e-3, f"fused kernel disagrees with reference: max|diff|={err}"
    print("KERNEL_OK")
</pallas_src>

<mosaic_0001>
module attributes {stable_mosaic.version = 11 : i64} {
  func.func @_fused_forward_kernel(%arg0: memref<2x16x64xf32, #tpu.memory_space<vmem>>, %arg1: memref<2x64xf32, #tpu.memory_space<vmem>>, %arg2: memref<3x64x224xbf16, #tpu.memory_space<vmem>>, %arg3: memref<3x224x160xbf16, #tpu.memory_space<vmem>>, %arg4: memref<5x160x64xbf16, #tpu.memory_space<vmem>>, %arg5: memref<16x256xf32, #tpu.memory_space<vmem>>, %arg6: memref<128x64xf32, #tpu.memory_space<vmem>>, %arg7: memref<2x1xf32, #tpu.memory_space<vmem>>) attributes {dimension_semantics = [], scalar_prefetch = 0 : i64, scratch_operands = 0 : i64, tpu.core_type = #tpu.core_type<tc>} {
    %c0 = arith.constant 0 : index
    %c0_0 = arith.constant 0 : index
    %c0_1 = arith.constant 0 : index
    %0 = vector.load %arg0[%c0, %c0_0, %c0_1] : memref<2x16x64xf32, #tpu.memory_space<vmem>>, vector<1x16x64xf32>
    %1 = vector.shape_cast %0 : vector<1x16x64xf32> to vector<16x64xf32>
    %c1 = arith.constant 1 : index
    %c0_2 = arith.constant 0 : index
    %c0_3 = arith.constant 0 : index
    %2 = vector.load %arg0[%c1, %c0_2, %c0_3] : memref<2x16x64xf32, #tpu.memory_space<vmem>>, vector<1x16x64xf32>
    %3 = vector.shape_cast %2 : vector<1x16x64xf32> to vector<16x64xf32>
    %c0_4 = arith.constant 0 : index
    %c0_5 = arith.constant 0 : index
    %c0_6 = arith.constant 0 : index
    %4 = vector.load %arg2[%c0_4, %c0_5, %c0_6] : memref<3x64x224xbf16, #tpu.memory_space<vmem>>, vector<1x64x224xbf16>
    %5 = vector.shape_cast %4 : vector<1x64x224xbf16> to vector<64x224xbf16>
    %cst = arith.constant dense<0.000000e+00> : vector<16x224xf32>
    %6 = tpu.matmul %1, %5, %cst {dimension_numbers = #tpu.dot_dimension_numbers<[1], [0], [0], [1], [0, 0, 1, 1], [], []>} : vector<16x64xf32>, vector<64x224xbf16>, vector<16x224xf32> -> vector<16x224xf32>
    %c1_7 = arith.constant 1 : index
    %c0_8 = arith.constant 0 : index
    %c0_9 = arith.constant 0 : index
    %7 = vector.load %arg2[%c1_7, %c0_8, %c0_9] : memref<3x64x224xbf16, #tpu.memory_space<vmem>>, vector<1x64x224xbf16>
    %8 = vector.shape_cast %7 : vector<1x64x224xbf16> to vector<64x224xbf16>
    %cst_10 = arith.constant dense<0.000000e+00> : vector<16x224xf32>
    %9 = tpu.matmul %3, %8, %cst_10 {dimension_numbers = #tpu.dot_dimension_numbers<[1], [0], [0], [1], [0, 0, 1, 1], [], []>} : vector<16x64xf32>, vector<64x224xbf16>, vector<16x224xf32> -> vector<16x224xf32>
    %10 = vector.extract_strided_slice %1 {offsets = [1, 0], sizes = [15, 64], strides = [1, 1]} : vector<16x64xf32> to vector<15x64xf32>
    %c2 = arith.constant 2 : index
    %c0_11 = arith.constant 0 : index
    %c0_12 = arith.constant 0 : index
    %11 = vector.load %arg2[%c2, %c0_11, %c0_12] : memref<3x64x224xbf16, #tpu.memory_space<vmem>>, vector<1x64x224xbf16>
    %12 = vector.shape_cast %11 : vector<1x64x224xbf16> to vector<64x224xbf16>
    %cst_13 = arith.constant dense<0.000000e+00> : vector<15x224xf32>
    %13 = tpu.matmul %10, %12, %cst_13 {dimension_numbers = #tpu.dot_dimension_numbers<[1], [0], [0], [1], [0, 0, 1, 1], [], []>} : vector<15x64xf32>, vector<64x224xbf16>, vector<15x224xf32> -> vector<15x224xf32>
    %14 = vector.extract_strided_slice %6 {offsets = [0, 0], sizes = [15, 224], strides = [1, 1]} : vector<16x224xf32> to vector<15x224xf32>
    %15 = vector.extract_strided_slice %9 {offsets = [0, 0], sizes = [15, 224], strides = [1, 1]} : vector<16x224xf32> to vector<15x224xf32>
    %16 = arith.addf %14, %15 : vector<15x224xf32>
    %17 = arith.addf %16, %13 : vector<15x224xf32>
    %c0_14 = arith.constant 0 : index
    %c0_15 = arith.constant 0 : index
    %18 = vector.load %arg5[%c0_14, %c0_15] : memref<16x256xf32, #tpu.memory_space<vmem>>, vector<1x224xf32>
    %19 = vector.broadcast %18 : vector<1x224xf32> to vector<15x224xf32>
    %20 = arith.addf %17, %19 : vector<15x224xf32>
    %cst_16 = arith.constant 0.000000e+00 : f32
    %21 = vector.broadcast %cst_16 : f32 to vector<15x224xf32>
    %22 = arith.maximumf %20, %21 : vector<15x224xf32>
    %23 = vector.extract_strided_slice %22 {offsets = [0, 0], sizes = [13, 224], strides = [1, 1]} : vector<15x224xf32> to vector<13x224xf32>
    %c0_17 = arith.constant 0 : index
    %c0_18 = arith.constant 0 : index
    %c0_19 = arith.constant 0 : index
    %24 = vector.load %arg3[%c0_17, %c0_18, %c0_19] : memref<3x224x160xbf16, #tpu.memory_space<vmem>>, vector<1x224x160xbf16>
    %25 = vector.shape_cast %24 : vector<1x224x160xbf16> to vector<224x160xbf16>
    %cst_20 = arith.constant dense<0.000000e+00> : vector<13x160xf32>
    %26 = tpu.matmul %23, %25, %cst_20 {dimension_numbers = #tpu.dot_dimension_numbers<[1], [0], [0], [1], [0, 0, 1, 1], [], []>} : vector<13x224xf32>, vector<224x160xbf16>, vector<13x160xf32> -> vector<13x160xf32>
    %27 = vector.extract_strided_slice %22 {offsets = [1, 0], sizes = [13, 224], strides = [1, 1]} : vector<15x224xf32> to vector<13x224xf32>
    %c1_21 = arith.constant 1 : index
    %c0_22 = arith.constant 0 : index
    %c0_23 = arith.constant 0 : index
    %28 = vector.load %arg3[%c1_21, %c0_22, %c0_23] : memref<3x224x160xbf16, #tpu.memory_space<vmem>>, vector<1x224x160xbf16>
    %29 = vector.shape_cast %28 : vector<1x224x160xbf16> to vector<224x160xbf16>
    %cst_24 = arith.constant dense<0.000000e+00> : vector<13x160xf32>
    %30 = tpu.matmul %27, %29, %cst_24 {dimension_numbers = #tpu.dot_dimension_numbers<[1], [0], [0], [1], [0, 0, 1, 1], [], []>} : vector<13x224xf32>, vector<224x160xbf16>, vector<13x160xf32> -> vector<13x160xf32>
    %31 = vector.extract_strided_slice %22 {offsets = [2, 0], sizes = [13, 224], strides = [1, 1]} : vector<15x224xf32> to vector<13x224xf32>
    %c2_25 = arith.constant 2 : index
    %c0_26 = arith.constant 0 : index
    %c0_27 = arith.constant 0 : index
    %32 = vector.load %arg3[%c2_25, %c0_26, %c0_27] : memref<3x224x160xbf16, #tpu.memory_space<vmem>>, vector<1x224x160xbf16>
    %33 = vector.shape_cast %32 : vector<1x224x160xbf16> to vector<224x160xbf16>
    %cst_28 = arith.constant dense<0.000000e+00> : vector<13x160xf32>
    %34 = tpu.matmul %31, %33, %cst_28 {dimension_numbers = #tpu.dot_dimension_numbers<[1], [0], [0], [1], [0, 0, 1, 1], [], []>} : vector<13x224xf32>, vector<224x160xbf16>, vector<13x160xf32> -> vector<13x160xf32>
    %35 = arith.addf %26, %30 : vector<13x160xf32>
    %36 = arith.addf %35, %34 : vector<13x160xf32>
    %c1_29 = arith.constant 1 : index
    %c0_30 = arith.constant 0 : index
    %37 = vector.load %arg5[%c1_29, %c0_30] : memref<16x256xf32, #tpu.memory_space<vmem>>, vector<1x160xf32>
    %38 = vector.broadcast %37 : vector<1x160xf32> to vector<13x160xf32>
    %39 = arith.addf %36, %38 : vector<13x160xf32>
    %cst_31 = arith.constant 0.000000e+00 : f32
    %40 = vector.broadcast %cst_31 : f32 to vector<13x160xf32>
    %41 = arith.maximumf %39, %40 : vector<13x160xf32>
    %42 = vector.extract_strided_slice %41 {offsets = [0, 0], sizes = [9, 160], strides = [1, 1]} : vector<13x160xf32> to vector<9x160xf32>
    %c0_32 = arith.constant 0 : index
    %c0_33 = arith.constant 0 : index
    %c0_34 = arith.constant 0 : index
    %43 = vector.load %arg4[%c0_32, %c0_33, %c0_34] : memref<5x160x64xbf16, #tpu.memory_space<vmem>>, vector<1x160x64xbf16>
    %44 = vector.shape_cast %43 : vector<1x160x64xbf16> to vector<160x64xbf16>
    %cst_35 = arith.constant dense<0.000000e+00> : vector<9x64xf32>
    %45 = tpu.matmul %42, %44, %cst_35 {dimension_numbers = #tpu.dot_dimension_numbers<[1], [0], [0], [1], [0, 0, 1, 1], [], []>} : vector<9x160xf32>, vector<160x64xbf16>, vector<9x64xf32> -> vector<9x64xf32>
    %46 = vector.extract_strided_slice %41 {offsets = [1, 0], sizes = [9, 160], strides = [1, 1]} : vector<13x160xf32> to vector<9x160xf32>
    %c1_36 = arith.constant 1 : index
    %c0_37 = arith.constant 0 : index
    %c0_38 = arith.constant 0 : index
    %47 = vector.load %arg4[%c1_36, %c0_37, %c0_38] : memref<5x160x64xbf16, #tpu.memory_space<vmem>>, vector<1x160x64xbf16>
    %48 = vector.shape_cast %47 : vector<1x160x64xbf16> to vector<160x64xbf16>
    %cst_39 = arith.constant dense<0.000000e+00> : vector<9x64xf32>
    %49 = tpu.matmul %46, %48, %cst_39 {dimension_numbers = #tpu.dot_dimension_numbers<[1], [0], [0], [1], [0, 0, 1, 1], [], []>} : vector<9x160xf32>, vector<160x64xbf16>, vector<9x64xf32> -> vector<9x64xf32>
    %50 = vector.extract_strided_slice %41 {offsets = [2, 0], sizes = [9, 160], strides = [1, 1]} : vector<13x160xf32> to vector<9x160xf32>
    %c2_40 = arith.constant 2 : index
    %c0_41 = arith.constant 0 : index
    %c0_42 = arith.constant 0 : index
    %51 = vector.load %arg4[%c2_40, %c0_41, %c0_42] : memref<5x160x64xbf16, #tpu.memory_space<vmem>>, vector<1x160x64xbf16>
    %52 = vector.shape_cast %51 : vector<1x160x64xbf16> to vector<160x64xbf16>
    %cst_43 = arith.constant dense<0.000000e+00> : vector<9x64xf32>
    %53 = tpu.matmul %50, %52, %cst_43 {dimension_numbers = #tpu.dot_dimension_numbers<[1], [0], [0], [1], [0, 0, 1, 1], [], []>} : vector<9x160xf32>, vector<160x64xbf16>, vector<9x64xf32> -> vector<9x64xf32>
    %54 = vector.extract_strided_slice %41 {offsets = [3, 0], sizes = [9, 160], strides = [1, 1]} : vector<13x160xf32> to vector<9x160xf32>
    %c3 = arith.constant 3 : index
    %c0_44 = arith.constant 0 : index
    %c0_45 = arith.constant 0 : index
    %55 = vector.load %arg4[%c3, %c0_44, %c0_45] : memref<5x160x64xbf16, #tpu.memory_space<vmem>>, vector<1x160x64xbf16>
    %56 = vector.shape_cast %55 : vector<1x160x64xbf16> to vector<160x64xbf16>
    %cst_46 = arith.constant dense<0.000000e+00> : vector<9x64xf32>
    %57 = tpu.matmul %54, %56, %cst_46 {dimension_numbers = #tpu.dot_dimension_numbers<[1], [0], [0], [1], [0, 0, 1, 1], [], []>} : vector<9x160xf32>, vector<160x64xbf16>, vector<9x64xf32> -> vector<9x64xf32>
    %58 = vector.extract_strided_slice %41 {offsets = [4, 0], sizes = [9, 160], strides = [1, 1]} : vector<13x160xf32> to vector<9x160xf32>
    %c4 = arith.constant 4 : index
    %c0_47 = arith.constant 0 : index
    %c0_48 = arith.constant 0 : index
    %59 = vector.load %arg4[%c4, %c0_47, %c0_48] : memref<5x160x64xbf16, #tpu.memory_space<vmem>>, vector<1x160x64xbf16>
    %60 = vector.shape_cast %59 : vector<1x160x64xbf16> to vector<160x64xbf16>
    %cst_49 = arith.constant dense<0.000000e+00> : vector<9x64xf32>
    %61 = tpu.matmul %58, %60, %cst_49 {dimension_numbers = #tpu.dot_dimension_numbers<[1], [0], [0], [1], [0, 0, 1, 1], [], []>} : vector<9x160xf32>, vector<160x64xbf16>, vector<9x64xf32> -> vector<9x64xf32>
    %62 = arith.addf %45, %49 : vector<9x64xf32>
    %63 = arith.addf %53, %57 : vector<9x64xf32>
    %64 = arith.addf %62, %63 : vector<9x64xf32>
    %65 = arith.addf %64, %61 : vector<9x64xf32>
    %66 = vector.extract_strided_slice %65 {offsets = [0, 0], sizes = [1, 64], strides = [1, 1]} : vector<9x64xf32> to vector<1x64xf32>
    %67 = vector.extract_strided_slice %65 {offsets = [8, 0], sizes = [1, 64], strides = [1, 1]} : vector<9x64xf32> to vector<1x64xf32>
    %68 = tpu.concatenate %66, %67 in 0 : vector<1x64xf32>, vector<1x64xf32> -> vector<2x64xf32>
    %c2_50 = arith.constant 2 : index
    %c0_51 = arith.constant 0 : index
    %69 = vector.load %arg5[%c2_50, %c0_51] : memref<16x256xf32, #tpu.memory_space<vmem>>, vector<1x64xf32>
    %70 = vector.broadcast %69 : vector<1x64xf32> to vector<2x64xf32>
    %71 = arith.addf %68, %70 : vector<2x64xf32>
    %c5 = arith.constant 5 : index
    %c0_52 = arith.constant 0 : index
    %72 = vector.load %arg5[%c5, %c0_52] : memref<16x256xf32, #tpu.memory_space<vmem>>, vector<1x64xf32>
    %cst_53 = arith.constant dense<0.000000e+00> : vector<2xf32>
    %73 = vector.multi_reduction <add>, %71, %cst_53 [1] : vector<2x64xf32> to vector<2xf32>
    %74 = vector.shape_cast %73 : vector<2xf32> to vector<2x1xf32>
    %cst_54 = arith.constant 2.000000e-02 : f32
    %75 = vector.broadcast %cst_54 : f32 to vector<2x1xf32>
    %76 = arith.mulf %74, %75 : vector<2x1xf32>
    %77 = vector.broadcast %76 : vector<2x1xf32> to vector<2x64xf32>
    %78 = arith.subf %71, %77 : vector<2x64xf32>
    %79 = vector.broadcast %72 : vector<1x64xf32> to vector<2x64xf32>
    %80 = arith.mulf %78, %79 : vector<2x64xf32>
    %81 = arith.mulf %80, %80 : vector<2x64xf32>
    %cst_55 = arith.constant dense<0.000000e+00> : vector<2xf32>
    %82 = vector.multi_reduction <add>, %81, %cst_55 [1] : vector<2x64xf32> to vector<2xf32>
    %83 = vector.shape_cast %82 : vector<2xf32> to vector<2x1xf32>
    %cst_56 = arith.constant 2.000000e-02 : f32
    %84 = vector.broadcast %cst_56 : f32 to vector<2x1xf32>
    %85 = arith.mulf %83, %84 : vector<2x1xf32>
    %cst_57 = arith.constant 9.99999974E-6 : f32
    %86 = vector.broadcast %cst_57 : f32 to vector<2x1xf32>
    %87 = arith.addf %85, %86 : vector<2x1xf32>
    %88 = math.rsqrt %87 : vector<2x1xf32>
    %89 = vector.broadcast %88 : vector<2x1xf32> to vector<2x64xf32>
    %90 = arith.mulf %80, %89 : vector<2x64xf32>
    %c3_58 = arith.constant 3 : index
    %c0_59 = arith.constant 0 : index
    %91 = vector.load %arg5[%c3_58, %c0_59] : memref<16x256xf32, #tpu.memory_space<vmem>>, vector<1x64xf32>
    %92 = vector.broadcast %91 : vector<1x64xf32> to vector<2x64xf32>
    %93 = arith.mulf %90, %92 : vector<2x64xf32>
    %c4_60 = arith.constant 4 : index
    %c0_61 = arith.constant 0 : index
    %94 = vector.load %arg5[%c4_60, %c0_61] : memref<16x256xf32, #tpu.memory_space<vmem>>, vector<1x64xf32>
    %95 = vector.broadcast %94 : vector<1x64xf32> to vector<2x64xf32>
    %96 = arith.addf %93, %95 : vector<2x64xf32>
    %97 = math.tanh %96 : vector<2x64xf32>
    %c0_62 = arith.constant 0 : index
    %c0_63 = arith.constant 0 : index
    %98 = vector.load %arg1[%c0_62, %c0_63] : memref<2x64xf32, #tpu.memory_space<vmem>>, vector<2x64xf32>
    %99 = arith.addf %97, %98 : vector<2x64xf32>
    %c0_64 = arith.constant 0 : index
    %c0_65 = arith.constant 0 : index
    %100 = vector.load %arg6[%c0_64, %c0_65] : memref<128x64xf32, #tpu.memory_space<vmem>>, vector<64x64xf32>
    %cst_66 = arith.constant dense<0.000000e+00> : vector<2x64xf32>
    %101 = tpu.matmul %99, %100, %cst_66 {dimension_numbers = #tpu.dot_dimension_numbers<[1], [0], [0], [1], [0, 0, 1, 1], [], []>} : vector<2x64xf32>, vector<64x64xf32>, vector<2x64xf32> -> vector<2x64xf32>
    %c6 = arith.constant 6 : index
    %c0_67 = arith.constant 0 : index
    %102 = vector.load %arg5[%c6, %c0_67] : memref<16x256xf32, #tpu.memory_space<vmem>>, vector<1x64xf32>
    %103 = vector.broadcast %102 : vector<1x64xf32> to vector<2x64xf32>
    %104 = arith.addf %101, %103 : vector<2x64xf32>
    %cst_68 = arith.constant 0.000000e+00 : f32
    %105 = vector.broadcast %cst_68 : f32 to vector<2x64xf32>
    %106 = arith.maximumf %104, %105 : vector<2x64xf32>
    %c64 = arith.constant 64 : index
    %c0_69 = arith.constant 0 : index
    %107 = vector.load %arg6[%c64, %c0_69] : memref<128x64xf32, #tpu.memory_space<vmem>>, vector<64x64xf32>
    %cst_70 = arith.constant dense<0.000000e+00> : vector<2x64xf32>
    %108 = tpu.matmul %106, %107, %cst_70 {dimension_numbers = #tpu.dot_dimension_numbers<[1], [0], [0], [1], [0, 0, 1, 1], [], []>} : vector<2x64xf32>, vector<64x64xf32>, vector<2x64xf32> -> vector<2x64xf32>
    %c7 = arith.constant 7 : index
    %c0_71 = arith.constant 0 : index
    %109 = vector.load %arg5[%c7, %c0_71] : memref<16x256xf32, #tpu.memory_space<vmem>>, vector<1x64xf32>
    %110 = vector.broadcast %109 : vector<1x64xf32> to vector<2x64xf32>
    %111 = arith.addf %108, %110 : vector<2x64xf32>
    %cst_72 = arith.constant 0.000000e+00 : f32
    %112 = vector.broadcast %cst_72 : f32 to vector<2x64xf32>
    %113 = arith.maximumf %111, %112 : vector<2x64xf32>
    %c8 = arith.constant 8 : index
    %c0_73 = arith.constant 0 : index
    %114 = vector.load %arg5[%c8, %c0_73] : memref<16x256xf32, #tpu.memory_space<vmem>>, vector<1x64xf32>
    %115 = vector.broadcast %114 : vector<1x64xf32> to vector<2x64xf32>
    %116 = arith.mulf %113, %115 : vector<2x64xf32>
    %cst_74 = arith.constant dense<0.000000e+00> : vector<2xf32>
    %117 = vector.multi_reduction <add>, %116, %cst_74 [1] : vector<2x64xf32> to vector<2xf32>
    %118 = vector.shape_cast %117 : vector<2xf32> to vector<2x1xf32>
    %c9 = arith.constant 9 : index
    %c0_75 = arith.constant 0 : index
    %119 = vector.load %arg5[%c9, %c0_75] : memref<16x256xf32, #tpu.memory_space<vmem>>, vector<1x1xf32>
    %120 = vector.broadcast %119 : vector<1x1xf32> to vector<2x1xf32>
    %121 = arith.addf %118, %120 : vector<2x1xf32>
    %c0_76 = arith.constant 0 : index
    %c0_77 = arith.constant 0 : index
    %122 = vector.load %arg7[%c0_76, %c0_77] : memref<2x1xf32, #tpu.memory_space<vmem>>, vector<2x1xf32>
    tpu.vector_store %arg7[%c0_76, %c0_77], %121 {strides = array<i32>} : memref<2x1xf32, #tpu.memory_space<vmem>>, vector<2x1xf32>,
    return
  }
}

</mosaic_0001>

<llo_original>
// kernel: model_wrapper_forward.1
$region0: #{model_wrapper_forward.1}
  #allocation0 [shape = 'u32[]', space=smem, size = 0x4, offset = 0x4, fixed_abs, tag = 'smem constant byte address 0x4 - core index']
  #allocation1 [shape = 'u32[144,128]{1,0:T(1,128)}', space=vmem, size = 0x12000, scoped, tag = 'internal scratch']
  %s0 = inlined_call_operand.vmem [shape: f32[2,16,64], index: 0, kind: input, shape index: {}]
  %s1 = inlined_call_operand.vmem [shape: f32[2,64], index: 1, kind: input, shape index: {}]
  %s2 = inlined_call_operand.vmem [shape: bf16[3,64,224], index: 2, kind: input, shape index: {}]
  %s3 = inlined_call_operand.vmem [shape: bf16[3,224,160], index: 3, kind: input, shape index: {}]
  %s4 = inlined_call_operand.vmem [shape: bf16[5,160,64], index: 4, kind: input, shape index: {}]
  %s5 = inlined_call_operand.vmem [shape: f32[16,256], index: 5, kind: input, shape index: {}]
  %s6 = inlined_call_operand.vmem [shape: f32[128,64], index: 6, kind: input, shape index: {}]
  %s7 = inlined_call_operand.vmem [shape: f32[2,1], index: 7, kind: output, shape index: {}]
  %s8 = sld [smem:[#allocation0]]
  $region38: #{model_wrapper_forward.1} parent=0
    _
  %s10 = ssub.s32 1, %s8
  %s11 = scalar_select 0, %s10, %s8
  // Predicated region
  $region2: #{model_wrapper_forward.1} parent=0 // pred_check
    _
  $region3: #{model_wrapper_forward.1} parent=0 // pred_check_branch
    %13 = sbr.rel (0) target = $region5
  $region4: #{model_wrapper_forward.1} parent=0 // pred_region
    _
  $region5: #{model_wrapper_forward.1} parent=0 // pred_fallthru
    _
  // Predicated region
  $region6: #{model_wrapper_forward.1} parent=0 // pred_check
    _
  $region7: #{model_wrapper_forward.1} parent=0 // pred_check_branch
    %15 = sbr.rel (0) target = $region9
  $region8: #{model_wrapper_forward.1} parent=0 // pred_region
    _
  $region9: #{model_wrapper_forward.1} parent=0 // pred_fallthru
    _
  // Predicated region
  $region10: #{model_wrapper_forward.1} parent=0 // pred_check
    _
  $region11: #{model_wrapper_forward.1} parent=0 // pred_check_branch
    %17 = sbr.rel (0) target = $region13
  $region12: #{model_wrapper_forward.1} parent=0 // pred_region
    _
  $region13: #{model_wrapper_forward.1} parent=0 // pred_fallthru
    _
  // Predicated region
  $region14: #{model_wrapper_forward.1} parent=0 // pred_check
    _
  $region15: #{model_wrapper_forward.1} parent=0 // pred_check_branch
    %19 = sbr.rel (0) target = $region17
  $region16: #{model_wrapper_forward.1} parent=0 // pred_region
    _
  $region17: #{model_wrapper_forward.1} parent=0 // pred_fallthru
    _
  // Predicated region
  $region18: #{model_wrapper_forward.1} parent=0 // pred_check
    _
  $region19: #{model_wrapper_forward.1} parent=0 // pred_check_branch
    %21 = sbr.rel (0) target = $region21
  $region20: #{model_wrapper_forward.1} parent=0 // pred_region
    _
  $region21: #{model_wrapper_forward.1} parent=0 // pred_fallthru
    _
  // Predicated region
  $region22: #{model_wrapper_forward.1} parent=0 // pred_check
    _
  $region23: #{model_wrapper_forward.1} parent=0 // pred_check_branch
    %23 = sbr.rel (0) target = $region25
  $region24: #{model_wrapper_forward.1} parent=0 // pred_region
    _
  $region25: #{model_wrapper_forward.1} parent=0 // pred_fallthru
    _
  // Predicated region
  $region26: #{model_wrapper_forward.1} parent=0 // pred_check
    _
  $region27: #{model_wrapper_forward.1} parent=0 // pred_check_branch
    %25 = sbr.rel (0) target = $region29
  $region28: #{model_wrapper_forward.1} parent=0 // pred_region
    _
  $region29: #{model_wrapper_forward.1} parent=0 // pred_fallthru
    _
  %v27 = vld [vmem:[%s0] sm:$0xff]
  %v28 = vld [vmem:[%s0 + $0x8] sm:$0xff]
  %s29 = scalar_lea.vmem %s0, 16
  %v30 = vld [vmem:[%s29] sm:$0xff]
  %v31 = vld [vmem:[%s29 + $0x8] sm:$0xff]
  %v32 = vld [vmem:[%s2] sm:$0xff]
  %v33 = vld [vmem:[%s2 + $0x8] sm:$0xff]
  %v34 = vld [vmem:[%s2 + $0x10] sm:$0xff]
  %v35 = vld [vmem:[%s2 + $0x18] sm:$0xff]
  %v36 = vld [vmem:[%s2 + $0x20] sm:$0xff]
  %v37 = vld [vmem:[%s2 + $0x28] sm:$0xff]
  %v38 = vld [vmem:[%s2 + $0x30] sm:$0xff]
  %v39 = vld [vmem:[%s2 + $0x38] sm:$0xff]
  %v48 = vunpack.c.l.b16 %v32
  %v49 = vunpack.c.h.b16 %v32
  %v50 = vunpack.c.l.b16 %v33
  %v51 = vunpack.c.h.b16 %v33
  %v52 = vunpack.c.l.b16 %v34
  %v53 = vunpack.c.h.b16 %v34
  %v54 = vunpack.c.l.b16 %v35
  %v55 = vunpack.c.h.b16 %v35
  %v56 = vunpack.c.l.b16 %v36
  %v57 = vunpack.c.h.b16 %v36
  %v58 = vunpack.c.l.b16 %v37
  %v59 = vunpack.c.h.b16 %v37
  %v60 = vunpack.c.l.b16 %v38
  %v61 = vunpack.c.h.b16 %v38
  %v62 = vunpack.c.l.b16 %v39
  %v63 = vunpack.c.h.b16 %v39
  %v64 = vpack.c.b16 %v50, %v48
  %v65 = vpack.c.b16 %v51, %v49
  %v66 = vpack.c.b16 %v54, %v52
  %v67 = vpack.c.b16 %v55, %v53
  %v68 = vpack.c.b16 %v58, %v56
  %v69 = vpack.c.b16 %v59, %v57
  %v70 = vpack.c.b16 %v62, %v60
  %v71 = vpack.c.b16 %v63, %v61
  %vm80 = vcmask 523264
  %v82 = vsel %vm80, %v27, 0
  %v85 = vsel %vm80, %v28, 0
  %87 = vmatprep.subr.bf16.mxu0 %v65
  %88 = vmatpush1.bf16.msra.mxu0 %v64
  %89 = vmatprep.subr.bf16.mxu0 %v67
  %90 = vmatpush1.bf16.msra.mxu0 %v66
  %91 = vmatprep.subr.bf16.mxu0 %v69
  %92 = vmatpush1.bf16.msra.mxu0 %v68
  %93 = vmatprep.subr.bf16.mxu0 %v71
  %94 = vmatpush1.bf16.msra.mxu0 %v70
  %95 = vmatprep.subr.bf16.mxu0 0
  %96 = vmatpush1.bf16.msra.mxu0 0
  %97 = vmatprep.subr.bf16.mxu0 0
  %98 = vmatpush1.bf16.msra.mxu0 0
  %99 = vmatprep.subr.bf16.mxu0 0
  %100 = vmatpush1.bf16.msra.mxu0 0
  %101 = vmatprep.subr.bf16.mxu0 0
  %102 = vmatpush1.bf16.msra.mxu0 0
  %103 = vmatprep.subr.bf16.mxu0 0
  %104 = vmatpush1.bf16.msra.mxu0 0
  %105 = vmatprep.subr.bf16.mxu0 0
  %106 = vmatpush1.bf16.msra.mxu0 0
  %107 = vmatprep.subr.bf16.mxu0 0
  %108 = vmatpush1.bf16.msra.mxu0 0
  %109 = vmatprep.subr.bf16.mxu0 0
  %110 = vmatpush1.bf16.msra.mxu0 0
  %111 = vmatprep.subr.bf16.mxu0 0
  %112 = vmatpush1.bf16.msra.mxu0 0
  %113 = vmatprep.subr.bf16.mxu0 0
  %114 = vmatpush1.bf16.msra.mxu0 0
  %115 = vmatprep.subr.bf16.mxu0 0
  %116 = vmatpush1.bf16.msra.mxu0 0
  %117 = vmatprep.subr.bf16.mxu0 0
  %118 = vmatpush1.bf16.msra.mxu0 0
  %119 = vmatprep.mubr.f32.mxu0 0.0
  %120 = vmatmul.mubr.f32.gmra.mrb[0].mxu0 %v82
  %v121 = vpop.f32.mrb[0].mxu0
  %v122 = vadd.f32 0.0, %v121
  %v123 = vpop.f32.mrb[0].mxu0
  %v124 = vadd.f32 0.0, %v123
  %125 = vmatprep.mubr.f32.mxu0 0.0
  %126 = vmatmul.mubr.f32.gmra.mrb[0].mxu0 %v85
  %v127 = vpop.f32.mrb[0].mxu0
  %v128 = vadd.f32 0.0, %v127
  %v129 = vpop.f32.mrb[0].mxu0
  %v130 = vadd.f32 0.0, %v129
  %131 = vdwg.mxu0
  %s132 = scalar_lea.vmem %s2, 64
  %v133 = vld [vmem:[%s132] sm:$0xff]
  %v134 = vld [vmem:[%s132 + $0x8] sm:$0xff]
  %v135 = vld [vmem:[%s132 + $0x10] sm:$0xff]
  %v136 = vld [vmem:[%s132 + $0x18] sm:$0xff]
  %v137 = vld [vmem:[%s132 + $0x20] sm:$0xff]
  %v138 = vld [vmem:[%s132 + $0x28] sm:$0xff]
  %v139 = vld [vmem:[%s132 + $0x30] sm:$0xff]
  %v140 = vld [vmem:[%s132 + $0x38] sm:$0xff]
  %v149 = vunpack.c.l.b16 %v133
  %v150 = vunpack.c.h.b16 %v133
  %v151 = vunpack.c.l.b16 %v134
  %v152 = vunpack.c.h.b16 %v134
  %v153 = vunpack.c.l.b16 %v135
  %v154 = vunpack.c.h.b16 %v135
  %v155 = vunpack.c.l.b16 %v136
  %v156 = vunpack.c.h.b16 %v136
  %v157 = vunpack.c.l.b16 %v137
  %v158 = vunpack.c.h.b16 %v137
  %v159 = vunpack.c.l.b16 %v138
  %v160 = vunpack.c.h.b16 %v138
  %v161 = vunpack.c.l.b16 %v139
  %v162 = vunpack.c.h.b16 %v139
  %v163 = vunpack.c.l.b16 %v140
  %v164 = vunpack.c.h.b16 %v140
  %v165 = vpack.c.b16 %v151, %v149
  %v166 = vpack.c.b16 %v152, %v150
  %v167 = vpack.c.b16 %v155, %v153
  %v168 = vpack.c.b16 %v156, %v154
  %v169 = vpack.c.b16 %v159, %v157
  %v170 = vpack.c.b16 %v160, %v158
  %v171 = vpack.c.b16 %v163, %v161
  %v172 = vpack.c.b16 %v164, %v162
  %v182 = vsel %vm80, %v30, 0
  %v185 = vsel %vm80, %v31, 0
  %187 = vmatprep.subr.bf16.mxu0 %v166
  %188 = vmatpush1.bf16.msra.mxu0 %v165
  %189 = vmatprep.subr.bf16.mxu0 %v168
  %190 = vmatpush1.bf16.msra.mxu0 %v167
  %191 = vmatprep.subr.bf16.mxu0 %v170
  %192 = vmatpush1.bf16.msra.mxu0 %v169
  %193 = vmatprep.subr.bf16.mxu0 %v172
  %194 = vmatpush1.bf16.msra.mxu0 %v171
  %195 = vmatprep.subr.bf16.mxu0 0
  %196 = vmatpush1.bf16.msra.mxu0 0
  %197 = vmatprep.subr.bf16.mxu0 0
  %198 = vmatpush1.bf16.msra.mxu0 0
  %199 = vmatprep.subr.bf16.mxu0 0
  %200 = vmatpush1.bf16.msra.mxu0 0
  %201 = vmatprep.subr.bf16.mxu0 0
  %202 = vmatpush1.bf16.msra.mxu0 0
  %203 = vmatprep.subr.bf16.mxu0 0
  %204 = vmatpush1.bf16.msra.mxu0 0
  %205 = vmatprep.subr.bf16.mxu0 0
  %206 = vmatpush1.bf16.msra.mxu0 0
  %207 = vmatprep.subr.bf16.mxu0 0
  %208 = vmatpush1.bf16.msra.mxu0 0
  %209 = vmatprep.subr.bf16.mxu0 0
  %210 = vmatpush1.bf16.msra.mxu0 0
  %211 = vmatprep.subr.bf16.mxu0 0
  %212 = vmatpush1.bf16.msra.mxu0 0
  %213 = vmatprep.subr.bf16.mxu0 0
  %214 = vmatpush1.bf16.msra.mxu0 0
  %215 = vmatprep.subr.bf16.mxu0 0
  %216 = vmatpush1.bf16.msra.mxu0 0
  %217 = vmatprep.subr.bf16.mxu0 0
  %218 = vmatpush1.bf16.msra.mxu0 0
  %219 = vmatprep.mubr.f32.mxu0 0.0
  %220 = vmatmul.mubr.f32.gmra.mrb[0].mxu0 %v182
  %v221 = vpop.f32.mrb[0].mxu0
  %v222 = vadd.f32 0.0, %v221
  %v223 = vpop.f32.mrb[0].mxu0
  %v224 = vadd.f32 0.0, %v223
  %225 = vmatprep.mubr.f32.mxu0 0.0
  %226 = vmatmul.mubr.f32.gmra.mrb[0].mxu0 %v185
  %v227 = vpop.f32.mrb[0].mxu0
  %v228 = vadd.f32 0.0, %v227
  %v229 = vpop.f32.mrb[0].mxu0
  %v230 = vadd.f32 0.0, %v229
  %231 = vdwg.mxu0
  %s232 = scalar_lea.vmem %s2, 128
  %v233 = vld [vmem:[%s232] sm:$0xff]
  %v234 = vld [vmem:[%s232 + $0x8] sm:$0xff]
  %v235 = vld [vmem:[%s232 + $0x10] sm:$0xff]
  %v236 = vld [vmem:[%s232 + $0x18] sm:$0xff]
  %v237 = vld [vmem:[%s232 + $0x20] sm:$0xff]
  %v238 = vld [vmem:[%s232 + $0x28] sm:$0xff]
  %v239 = vld [vmem:[%s232 + $0x30] sm:$0xff]
  %v240 = vld [vmem:[%s232 + $0x38] sm:$0xff]
  %vm241 = vcmask 1046528
  %v242 = vrot.slane %v27, 1
  %v243 = vrot.slane %v28, 1
  %v244 = vsel %vm241, %v242, %v243
  %v253 = vunpack.c.l.b16 %v233
  %v254 = vunpack.c.h.b16 %v233
  %v255 = vunpack.c.l.b16 %v234
  %v256 = vunpack.c.h.b16 %v234
  %v257 = vunpack.c.l.b16 %v235
  %v258 = vunpack.c.h.b16 %v235
  %v259 = vunpack.c.l.b16 %v236
  %v260 = vunpack.c.h.b16 %v236
  %v261 = vunpack.c.l.b16 %v237
  %v262 = vunpack.c.h.b16 %v237
  %v263 = vunpack.c.l.b16 %v238
  %v264 = vunpack.c.h.b16 %v238
  %v265 = vunpack.c.l.b16 %v239
  %v266 = vunpack.c.h.b16 %v239
  %v267 = vunpack.c.l.b16 %v240
  %v268 = vunpack.c.h.b16 %v240
  %v269 = vpack.c.b16 %v255, %v253
  %v270 = vpack.c.b16 %v256, %v254
  %v271 = vpack.c.b16 %v259, %v257
  %v272 = vpack.c.b16 %v260, %v258
  %v273 = vpack.c.b16 %v263, %v261
  %v274 = vpack.c.b16 %v264, %v262
  %v275 = vpack.c.b16 %v267, %v265
  %v276 = vpack.c.b16 %v268, %v266
  %v285 = vsel %vm80, %v244, 0
  %v287 = vsel %vm80, %v243, 0
  %289 = vmatprep.subr.bf16.mxu0 %v270
  %290 = vmatpush1.bf16.msra.mxu0 %v269
  %291 = vmatprep.subr.bf16.mxu0 %v272
  %292 = vmatpush1.bf16.msra.mxu0 %v271
  %293 = vmatprep.subr.bf16.mxu0 %v274
  %294 = vmatpush1.bf16.msra.mxu0 %v273
  %295 = vmatprep.subr.bf16.mxu0 %v276
  %296 = vmatpush1.bf16.msra.mxu0 %v275
  %297 = vmatprep.subr.bf16.mxu0 0
  %298 = vmatpush1.bf16.msra.mxu0 0
  %299 = vmatprep.subr.bf16.mxu0 0
  %300 = vmatpush1.bf16.msra.mxu0 0
  %301 = vmatprep.subr.bf16.mxu0 0
  %302 = vmatpush1.bf16.msra.mxu0 0
  %303 = vmatprep.subr.bf16.mxu0 0
  %304 = vmatpush1.bf16.msra.mxu0 0
  %305 = vmatprep.subr.bf16.mxu0 0
  %306 = vmatpush1.bf16.msra.mxu0 0
  %307 = vmatprep.subr.bf16.mxu0 0
  %308 = vmatpush1.bf16.msra.mxu0 0
  %309 = vmatprep.subr.bf16.mxu0 0
  %310 = vmatpush1.bf16.msra.mxu0 0
  %311 = vmatprep.subr.bf16.mxu0 0
  %312 = vmatpush1.bf16.msra.mxu0 0
  %313 = vmatprep.subr.bf16.mxu0 0
  %314 = vmatpush1.bf16.msra.mxu0 0
  %315 = vmatprep.subr.bf16.mxu0 0
  %316 = vmatpush1.bf16.msra.mxu0 0
  %317 = vmatprep.subr.bf16.mxu0 0
  %318 = vmatpush1.bf16.msra.mxu0 0
  %319 = vmatprep.subr.bf16.mxu0 0
  %320 = vmatpush1.bf16.msra.mxu0 0
  %321 = vmatprep.mubr.f32.mxu0 0.0
  %322 = vmatmul.mubr.f32.gmra.mrb[0].mxu0 %v285
  %v323 = vpop.f32.mrb[0].mxu0
  %v324 = vadd.f32 0.0, %v323
  %v325 = vpop.f32.mrb[0].mxu0
  %v326 = vadd.f32 0.0, %v325
  %327 = vmatprep.mubr.f32.mxu0 0.0
  %328 = vmatmul.mubr.f32.gmra.mrb[0].mxu0 %v287
  %v329 = vpop.f32.mrb[0].mxu0
  %v330 = vadd.f32 0.0, %v329
  %v331 = vpop.f32.mrb[0].mxu0
  %v332 = vadd.f32 0.0, %v331
  %333 = vdwg.mxu0
  %v334 = vadd.f32 %v122, %v222
  %v335 = vadd.f32 %v124, %v224
  %v336 = vadd.f32 %v128, %v228
  %v337 = vadd.f32 %v130, %v230
  %v338 = vadd.f32 %v334, %v324
  %v339 = vadd.f32 %v335, %v326
  %v340 = vadd.f32 %v336, %v330
  %v341 = vadd.f32 %v337, %v332
  %v342 = vld [vmem:[%s5] ss:$8 sm:$0x3]
  %v344 = vlaneseq
  %v345 = vshrl.u32 %v344, 7
  %v346 = vsub.s32 0, %v345
  %v347 = vrot.slane %v342, %v346
  %v348 = vlaneseq
  %v349 = vshrl.u32 %v348, 7
  %v350 = vsub.s32 1, %v349
  %v351 = vrot.slane %v342, %v350
  %v354 = vadd.f32 %v338, %v347
  %v355 = vadd.f32 %v339, %v351
  %v356 = vadd.f32 %v340, %v347
  %v357 = vadd.f32 %v341, %v351
  %v358 = vmax.f32 %v354, 0.0
  %v359 = vmax.f32 %v355, 0.0
  %v360 = vmax.f32 %v356, 0.0
  %v361 = vmax.f32 %v357, 0.0
  %v362 = vld [vmem:[%s3] sm:$0xff]
  %v363 = vld [vmem:[%s3 + $0x8] sm:$0xff]
  %v364 = vld [vmem:[%s3 + $0x10] sm:$0xff]
  %v365 = vld [vmem:[%s3 + $0x18] sm:$0xff]
  %v366 = vld [vmem:[%s3 + $0x20] sm:$0xff]
  %v367 = vld [vmem:[%s3 + $0x28] sm:$0xff]
  %v368 = vld [vmem:[%s3 + $0x30] sm:$0xff]
  %v369 = vld [vmem:[%s3 + $0x38] sm:$0xff]
  %v370 = vld [vmem:[%s3 + $0x40] sm:$0xff]
  %v371 = vld [vmem:[%s3 + $0x48] sm:$0xff]
  %v372 = vld [vmem:[%s3 + $0x50] sm:$0xff]
  %v373 = vld [vmem:[%s3 + $0x58] sm:$0xff]
  %v374 = vld [vmem:[%s3 + $0x60] sm:$0xff]
  %v375 = vld [vmem:[%s3 + $0x68] sm:$0xff]
  %v376 = vld [vmem:[%s3 + $0x70] sm:$0xff]
  %v377 = vld [vmem:[%s3 + $0x78] sm:$0xff]
  %v378 = vld [vmem:[%s3 + $0x80] sm:$0xff]
  %v379 = vld [vmem:[%s3 + $0x88] sm:$0xff]
  %v380 = vld [vmem:[%s3 + $0x90] sm:$0xff]
  %v381 = vld [vmem:[%s3 + $0x98] sm:$0xff]
  %v382 = vld [vmem:[%s3 + $0xa0] sm:$0xff]
  %v383 = vld [vmem:[%s3 + $0xa8] sm:$0xff]
  %v384 = vld [vmem:[%s3 + $0xb0] sm:$0xff]
  %v385 = vld [vmem:[%s3 + $0xb8] sm:$0xff]
  %v386 = vld [vmem:[%s3 + $0xc0] sm:$0xff]
  %v387 = vld [vmem:[%s3 + $0xc8] sm:$0xff]
  %v388 = vld [vmem:[%s3 + $0xd0] sm:$0xff]
  %v389 = vld [vmem:[%s3 + $0xd8] sm:$0xff]
  %s390 = scalar_lea.vmem %s3, 224
  %v391 = vld [vmem:[%s390] sm:$0xff]
  %v392 = vld [vmem:[%s390 + $0x8] sm:$0xff]
  %v393 = vld [vmem:[%s390 + $0x10] sm:$0xff]
  %v394 = vld [vmem:[%s390 + $0x18] sm:$0xff]
  %v395 = vld [vmem:[%s390 + $0x20] sm:$0xff]
  %v396 = vld [vmem:[%s390 + $0x28] sm:$0xff]
  %v397 = vld [vmem:[%s390 + $0x30] sm:$0xff]
  %v398 = vld [vmem:[%s390 + $0x38] sm:$0xff]
  %v399 = vld [vmem:[%s390 + $0x40] sm:$0xff]
  %v400 = vld [vmem:[%s390 + $0x48] sm:$0xff]
  %v401 = vld [vmem:[%s390 + $0x50] sm:$0xff]
  %v402 = vld [vmem:[%s390 + $0x58] sm:$0xff]
  %v403 = vld [vmem:[%s390 + $0x60] sm:$0xff]
  %v404 = vld [vmem:[%s390 + $0x68] sm:$0xff]
  %v405 = vld [vmem:[%s390 + $0x70] sm:$0xff]
  %v406 = vld [vmem:[%s390 + $0x78] sm:$0xff]
  %v407 = vld [vmem:[%s390 + $0x80] sm:$0xff]
  %v408 = vld [vmem:[%s390 + $0x88] sm:$0xff]
  %v409 = vld [vmem:[%s390 + $0x90] sm:$0xff]
  %v410 = vld [vmem:[%s390 + $0x98] sm:$0xff]
  %v411 = vld [vmem:[%s390 + $0xa0] sm:$0xff]
  %v412 = vld [vmem:[%s390 + $0xa8] sm:$0xff]
  %v413 = vld [vmem:[%s390 + $0xb0] sm:$0xff]
  %v414 = vld [vmem:[%s390 + $0xb8] sm:$0xff]
  %v415 = vld [vmem:[%s390 + $0xc0] sm:$0xff]
  %v416 = vld [vmem:[%s390 + $0xc8] sm:$0xff]
  %v417 = vld [vmem:[%s390 + $0xd0] sm:$0xff]
  %v418 = vld [vmem:[%s390 + $0xd8] sm:$0xff]
  %v423 = vrot.slane %v358, 1
  %v424 = vrot.slane %v360, 1
  %v425 = vsel %vm241, %v423, %v424
  %v426 = vrot.slane %v359, 1
  %v427 = vrot.slane %v361, 1
  %v428 = vsel %vm241, %v426, %v427
  %v459 = vunpack.c.l.b16 %v391
  %v460 = vunpack.c.h.b16 %v391
  %v461 = vunpack.c.l.b16 %v392
  %v462 = vunpack.c.h.b16 %v392
  %v463 = vunpack.c.l.b16 %v393
  %v464 = vunpack.c.h.b16 %v393
  %v465 = vunpack.c.l.b16 %v394
  %v466 = vunpack.c.h.b16 %v394
  %v467 = vunpack.c.l.b16 %v395
  %v468 = vunpack.c.h.b16 %v395
  %v469 = vunpack.c.l.b16 %v396
  %v470 = vunpack.c.h.b16 %v396
  %v471 = vunpack.c.l.b16 %v397
  %v472 = vunpack.c.h.b16 %v397
  %v473 = vunpack.c.l.b16 %v398
  %v474 = vunpack.c.h.b16 %v398
  %v475 = vunpack.c.l.b16 %v399
  %v476 = vunpack.c.h.b16 %v399
  %v477 = vunpack.c.l.b16 %v400
  %v478 = vunpack.c.h.b16 %v400
  %v479 = vunpack.c.l.b16 %v401
  %v480 = vunpack.c.h.b16 %v401
  %v481 = vunpack.c.l.b16 %v402
  %v482 = vunpack.c.h.b16 %v402
  %v483 = vunpack.c.l.b16 %v403
  %v484 = vunpack.c.h.b16 %v403
  %v485 = vunpack.c.l.b16 %v404
  %v486 = vunpack.c.h.b16 %v404
  %v487 = vunpack.c.l.b16 %v405
  %v488 = vunpack.c.h.b16 %v405
  %v489 = vunpack.c.l.b16 %v406
  %v490 = vunpack.c.h.b16 %v406
  %v491 = vunpack.c.l.b16 %v407
  %v492 = vunpack.c.h.b16 %v407
  %v493 = vunpack.c.l.b16 %v408
  %v494 = vunpack.c.h.b16 %v408
  %v495 = vunpack.c.l.b16 %v409
  %v496 = vunpack.c.h.b16 %v409
  %v497 = vunpack.c.l.b16 %v410
  %v498 = vunpack.c.h.b16 %v410
  %v499 = vunpack.c.l.b16 %v411
  %v500 = vunpack.c.h.b16 %v411
  %v501 = vunpack.c.l.b16 %v412
  %v502 = vunpack.c.h.b16 %v412
  %v503 = vunpack.c.l.b16 %v413
  %v504 = vunpack.c.h.b16 %v413
  %v505 = vunpack.c.l.b16 %v414
  %v506 = vunpack.c.h.b16 %v414
  %v507 = vunpack.c.l.b16 %v415
  %v508 = vunpack.c.h.b16 %v415
  %v509 = vunpack.c.l.b16 %v416
  %v510 = vunpack.c.h.b16 %v416
  %v511 = vunpack.c.l.b16 %v417
  %v512 = vunpack.c.h.b16 %v417
  %v513 = vunpack.c.l.b16 %v418
  %v514 = vunpack.c.h.b16 %v418
  %v515 = vpack.c.b16 %v461, %v459
  %v516 = vpack.c.b16 %v462, %v460
  %v517 = vpack.c.b16 %v465, %v463
  %v518 = vpack.c.b16 %v466, %v464
  %v519 = vpack.c.b16 %v469, %v467
  %v520 = vpack.c.b16 %v470, %v468
  %v521 = vpack.c.b16 %v473, %v471
  %v522 = vpack.c.b16 %v474, %v472
  %v523 = vpack.c.b16 %v477, %v475
  %v524 = vpack.c.b16 %v478, %v476
  %v525 = vpack.c.b16 %v481, %v479
  %v526 = vpack.c.b16 %v482, %v480
  %v527 = vpack.c.b16 %v485, %v483
  %v528 = vpack.c.b16 %v486, %v484
  %v529 = vpack.c.b16 %v489, %v487
  %v530 = vpack.c.b16 %v490, %v488
  %v531 = vpack.c.b16 %v493, %v491
  %v532 = vpack.c.b16 %v494, %v492
  %v533 = vpack.c.b16 %v497, %v495
  %v534 = vpack.c.b16 %v498, %v496
  %v535 = vpack.c.b16 %v501, %v499
  %v536 = vpack.c.b16 %v502, %v500
  %v537 = vpack.c.b16 %v505, %v503
  %v538 = vpack.c.b16 %v506, %v504
  %v539 = vpack.c.b16 %v509, %v507
  %v540 = vpack.c.b16 %v510, %v508
  %v541 = vpack.c.b16 %v513, %v511
  %v542 = vpack.c.b16 %v514, %v512
  %vm571 = vcmask 785408
  %v572 = vsel %vm571, %v428, 0
  %v574 = vsel %vm571, %v427, 0
  %576 = vmatprep.subr.bf16.mxu0 %v516
  %577 = vmatpush1.bf16.msra.mxu0 %v515
  %578 = vmatprep.subr.bf16.mxu0 %v518
  %579 = vmatpush1.bf16.msra.mxu0 %v517
  %580 = vmatprep.subr.bf16.mxu0 %v520
  %581 = vmatpush1.bf16.msra.mxu0 %v519
  %582 = vmatprep.subr.bf16.mxu0 %v522
  %583 = vmatpush1.bf16.msra.mxu0 %v521
  %584 = vmatprep.subr.bf16.mxu0 %v524
  %585 = vmatpush1.bf16.msra.mxu0 %v523
  %586 = vmatprep.subr.bf16.mxu0 %v526
  %587 = vmatpush1.bf16.msra.mxu0 %v525
  %588 = vmatprep.subr.bf16.mxu0 %v528
  %589 = vmatpush1.bf16.msra.mxu0 %v527
  %590 = vmatprep.subr.bf16.mxu0 %v530
  %591 = vmatpush1.bf16.msra.mxu0 %v529
  %592 = vmatprep.subr.bf16.mxu0 %v532
  %593 = vmatpush1.bf16.msra.mxu0 %v531
  %594 = vmatprep.subr.bf16.mxu0 %v534
  %595 = vmatpush1.bf16.msra.mxu0 %v533
  %596 = vmatprep.subr.bf16.mxu0 %v536
  %597 = vmatpush1.bf16.msra.mxu0 %v535
  %598 = vmatprep.subr.bf16.mxu0 %v538
  %599 = vmatpush1.bf16.msra.mxu0 %v537
  %600 = vmatprep.subr.bf16.mxu0 %v540
  %601 = vmatpush1.bf16.msra.mxu0 %v539
  %602 = vmatprep.subr.bf16.mxu0 %v542
  %603 = vmatpush1.bf16.msra.mxu0 %v541
  %604 = vmatprep.subr.bf16.mxu0 0
  %605 = vmatpush1.bf16.msra.mxu0 0
  %606 = vmatprep.subr.bf16.mxu0 0
  %607 = vmatpush1.bf16.msra.mxu0 0
  %608 = vmatprep.mubr.f32.mxu0 %v572
  %609 = vmatmul.mubr.f32.gmra.mrb[0].mxu0 %v425
  %v610 = vpop.f32.mrb[0].mxu0
  %v611 = vadd.f32 0.0, %v610
  %v612 = vpop.f32.mrb[0].mxu0
  %v613 = vadd.f32 0.0, %v612
  %614 = vmatprep.mubr.f32.mxu0 %v574
  %615 = vmatmul.mubr.f32.gmra.mrb[0].mxu0 %v424
  %v616 = vpop.f32.mrb[0].mxu0
  %v617 = vadd.f32 0.0, %v616
  %v618 = vpop.f32.mrb[0].mxu0
  %v619 = vadd.f32 0.0, %v618
  %620 = vdwg.mxu0
  %s621 = scalar_lea.vmem %s3, 448
  %v622 = vld [vmem:[%s621] sm:$0xff]
  %v623 = vld [vmem:[%s621 + $0x8] sm:$0xff]
  %v624 = vld [vmem:[%s621 + $0x10] sm:$0xff]
  %v625 = vld [vmem:[%s621 + $0x18] sm:$0xff]
  %v626 = vld [vmem:[%s621 + $0x20] sm:$0xff]
  %v627 = vld [vmem:[%s621 + $0x28] sm:$0xff]
  %v628 = vld [vmem:[%s621 + $0x30] sm:$0xff]
  %v629 = vld [vmem:[%s621 + $0x38] sm:$0xff]
  %v630 = vld [vmem:[%s621 + $0x40] sm:$0xff]
  %v631 = vld [vmem:[%s621 + $0x48] sm:$0xff]
  %v632 = vld [vmem:[%s621 + $0x50] sm:$0xff]
  %v633 = vld [vmem:[%s621 + $0x58] sm:$0xff]
  %v634 = vld [vmem:[%s621 + $0x60] sm:$0xff]
  %v635 = vld [vmem:[%s621 + $0x68] sm:$0xff]
  %v636 = vld [vmem:[%s621 + $0x70] sm:$0xff]
  %v637 = vld [vmem:[%s621 + $0x78] sm:$0xff]
  %v638 = vld [vmem:[%s621 + $0x80] sm:$0xff]
  %v639 = vld [vmem:[%s621 + $0x88] sm:$0xff]
  %v640 = vld [vmem:[%s621 + $0x90] sm:$0xff]
  %v641 = vld [vmem:[%s621 + $0x98] sm:$0xff]
  %v642 = vld [vmem:[%s621 + $0xa0] sm:$0xff]
  %v643 = vld [vmem:[%s621 + $0xa8] sm:$0xff]
  %v644 = vld [vmem:[%s621 + $0xb0] sm:$0xff]
  %v645 = vld [vmem:[%s621 + $0xb8] sm:$0xff]
  %v646 = vld [vmem:[%s621 + $0xc0] sm:$0xff]
  %v647 = vld [vmem:[%s621 + $0xc8] sm:$0xff]
  %v648 = vld [vmem:[%s621 + $0xd0] sm:$0xff]
  %v649 = vld [vmem:[%s621 + $0xd8] sm:$0xff]
  %vm650 = vcmask 1045504
  %v651 = vrot.slane %v358, 2
  %v652 = vrot.slane %v360, 2
  %v653 = vsel %vm650, %v651, %v652
  %v654 = vrot.slane %v359, 2
  %v655 = vrot.slane %v361, 2
  %v656 = vsel %vm650, %v654, %v655
  %v687 = vunpack.c.l.b16 %v622
  %v688 = vunpack.c.h.b16 %v622
  %v689 = vunpack.c.l.b16 %v623
  %v690 = vunpack.c.h.b16 %v623
  %v691 = vunpack.c.l.b16 %v624
  %v692 = vunpack.c.h.b16 %v624
  %v693 = vunpack.c.l.b16 %v625
  %v694 = vunpack.c.h.b16 %v625
  %v695 = vunpack.c.l.b16 %v626
  %v696 = vunpack.c.h.b16 %v626
  %v697 = vunpack.c.l.b16 %v627
  %v698 = vunpack.c.h.b16 %v627
  %v699 = vunpack.c.l.b16 %v628
  %v700 = vunpack.c.h.b16 %v628
  %v701 = vunpack.c.l.b16 %v629
  %v702 = vunpack.c.h.b16 %v629
  %v703 = vunpack.c.l.b16 %v630
  %v704 = vunpack.c.h.b16 %v630
  %v705 = vunpack.c.l.b16 %v631
  %v706 = vunpack.c.h.b16 %v631
  %v707 = vunpack.c.l.b16 %v632
  %v708 = vunpack.c.h.b16 %v632
  %v709 = vunpack.c.l.b16 %v633
  %v710 = vunpack.c.h.b16 %v633
  %v711 = vunpack.c.l.b16 %v634
  %v712 = vunpack.c.h.b16 %v634
  %v713 = vunpack.c.l.b16 %v635
  %v714 = vunpack.c.h.b16 %v635
  %v715 = vunpack.c.l.b16 %v636
  %v716 = vunpack.c.h.b16 %v636
  %v717 = vunpack.c.l.b16 %v637
  %v718 = vunpack.c.h.b16 %v637
  %v719 = vunpack.c.l.b16 %v638
  %v720 = vunpack.c.h.b16 %v638
  %v721 = vunpack.c.l.b16 %v639
  %v722 = vunpack.c.h.b16 %v639
  %v723 = vunpack.c.l.b16 %v640
  %v724 = vunpack.c.h.b16 %v640
  %v725 = vunpack.c.l.b16 %v641
  %v726 = vunpack.c.h.b16 %v641
  %v727 = vunpack.c.l.b16 %v642
  %v728 = vunpack.c.h.b16 %v642
  %v729 = vunpack.c.l.b16 %v643
  %v730 = vunpack.c.h.b16 %v643
  %v731 = vunpack.c.l.b16 %v644
  %v732 = vunpack.c.h.b16 %v644
  %v733 = vunpack.c.l.b16 %v645
  %v734 = vunpack.c.h.b16 %v645
  %v735 = vunpack.c.l.b16 %v646
  %v736 = vunpack.c.h.b16 %v646
  %v737 = vunpack.c.l.b16 %v647
  %v738 = vunpack.c.h.b16 %v647
  %v739 = vunpack.c.l.b16 %v648
  %v740 = vunpack.c.h.b16 %v648
  %v741 = vunpack.c.l.b16 %v649
  %v742 = vunpack.c.h.b16 %v649
  %v743 = vpack.c.b16 %v689, %v687
  %v744 = vpack.c.b16 %v690, %v688
  %v745 = vpack.c.b16 %v693, %v691
  %v746 = vpack.c.b16 %v694, %v692
  %v747 = vpack.c.b16 %v697, %v695
  %v748 = vpack.c.b16 %v698, %v696
  %v749 = vpack.c.b16 %v701, %v699
  %v750 = vpack.c.b16 %v702, %v700
  %v751 = vpack.c.b16 %v705, %v703
  %v752 = vpack.c.b16 %v706, %v704
  %v753 = vpack.c.b16 %v709, %v707
  %v754 = vpack.c.b16 %v710, %v708
  %v755 = vpack.c.b16 %v713, %v711
  %v756 = vpack.c.b16 %v714, %v712
  %v757 = vpack.c.b16 %v717, %v715
  %v758 = vpack.c.b16 %v718, %v716
  %v759 = vpack.c.b16 %v721, %v719
  %v760 = vpack.c.b16 %v722, %v720
  %v761 = vpack.c.b16 %v725, %v723
  %v762 = vpack.c.b16 %v726, %v724
  %v763 = vpack.c.b16 %v729, %v727
  %v764 = vpack.c.b16 %v730, %v728
  %v765 = vpack.c.b16 %v733, %v731
  %v766 = vpack.c.b16 %v734, %v732
  %v767 = vpack.c.b16 %v737, %v735
  %v768 = vpack.c.b16 %v738, %v736
  %v769 = vpack.c.b16 %v741, %v739
  %v770 = vpack.c.b16 %v742, %v740
  %v799 = vsel %vm571, %v656, 0
  %v801 = vsel %vm571, %v655, 0
  %803 = vmatprep.subr.bf16.mxu0 %v744
  %804 = vmatpush1.bf16.msra.mxu0 %v743
  %805 = vmatprep.subr.bf16.mxu0 %v746
  %806 = vmatpush1.bf16.msra.mxu0 %v745
  %807 = vmatprep.subr.bf16.mxu0 %v748
  %808 = vmatpush1.bf16.msra.mxu0 %v747
  %809 = vmatprep.subr.bf16.mxu0 %v750
  %810 = vmatpush1.bf16.msra.mxu0 %v749
  %811 = vmatprep.subr.bf16.mxu0 %v752
  %812 = vmatpush1.bf16.msra.mxu0 %v751
  %813 = vmatprep.subr.bf16.mxu0 %v754
  %814 = vmatpush1.bf16.msra.mxu0 %v753
  %815 = vmatprep.subr.bf16.mxu0 %v756
  %816 = vmatpush1.bf16.msra.mxu0 %v755
  %817 = vmatprep.subr.bf16.mxu0 %v758
  %818 = vmatpush1.bf16.msra.mxu0 %v757
  %819 = vmatprep.subr.bf16.mxu0 %v760
  %820 = vmatpush1.bf16.msra.mxu0 %v759
  %821 = vmatprep.subr.bf16.mxu0 %v762
  %822 = vmatpush1.bf16.msra.mxu0 %v761
  %823 = vmatprep.subr.bf16.mxu0 %v764
  %824 = vmatpush1.bf16.msra.mxu0 %v763
  %825 = vmatprep.subr.bf16.mxu0 %v766
  %826 = vmatpush1.bf16.msra.mxu0 %v765
  %827 = vmatprep.subr.bf16.mxu0 %v768
  %828 = vmatpush1.bf16.msra.mxu0 %v767
  %829 = vmatprep.subr.bf16.mxu0 %v770
  %830 = vmatpush1.bf16.msra.mxu0 %v769
  %831 = vmatprep.subr.bf16.mxu0 0
  %832 = vmatpush1.bf16.msra.mxu0 0
  %833 = vmatprep.subr.bf16.mxu0 0
  %834 = vmatpush1.bf16.msra.mxu0 0
  %835 = vmatprep.mubr.f32.mxu0 %v799
  %836 = vmatmul.mubr.f32.gmra.mrb[0].mxu0 %v653
  %v837 = vpop.f32.mrb[0].mxu0
  %v838 = vadd.f32 0.0, %v837
  %v839 = vpop.f32.mrb[0].mxu0
  %v840 = vadd.f32 0.0, %v839
  %841 = vmatprep.mubr.f32.mxu0 %v801
  %842 = vmatmul.mubr.f32.gmra.mrb[0].mxu0 %v652
  %v843 = vpop.f32.mrb[0].mxu0
  %v844 = vadd.f32 0.0, %v843
  %v845 = vpop.f32.mrb[0].mxu0
  %v846 = vadd.f32 0.0, %v845
  %847 = vdwg.mxu0
  %v876 = vunpack.c.l.b16 %v362
  %v877 = vunpack.c.h.b16 %v362
  %v878 = vunpack.c.l.b16 %v363
  %v879 = vunpack.c.h.b16 %v363
  %v880 = vunpack.c.l.b16 %v364
  %v881 = vunpack.c.h.b16 %v364
  %v882 = vunpack.c.l.b16 %v365
  %v883 = vunpack.c.h.b16 %v365
  %v884 = vunpack.c.l.b16 %v366
  %v885 = vunpack.c.h.b16 %v366
  %v886 = vunpack.c.l.b16 %v367
  %v887 = vunpack.c.h.b16 %v367
  %v888 = vunpack.c.l.b16 %v368
  %v889 = vunpack.c.h.b16 %v368
  %v890 = vunpack.c.l.b16 %v369
  %v891 = vunpack.c.h.b16 %v369
  %v892 = vunpack.c.l.b16 %v370
  %v893 = vunpack.c.h.b16 %v370
  %v894 = vunpack.c.l.b16 %v371
  %v895 = vunpack.c.h.b16 %v371
  %v896 = vunpack.c.l.b16 %v372
  %v897 = vunpack.c.h.b16 %v372
  %v898 = vunpack.c.l.b16 %v373
  %v899 = vunpack.c.h.b16 %v373
  %v900 = vunpack.c.l.b16 %v374
  %v901 = vunpack.c.h.b16 %v374
  %v902 = vunpack.c.l.b16 %v375
  %v903 = vunpack.c.h.b16 %v375
  %v904 = vunpack.c.l.b16 %v376
  %v905 = vunpack.c.h.b16 %v376
  %v906 = vunpack.c.l.b16 %v377
  %v907 = vunpack.c.h.b16 %v377
  %v908 = vunpack.c.l.b16 %v378
  %v909 = vunpack.c.h.b16 %v378
  %v910 = vunpack.c.l.b16 %v379
  %v911 = vunpack.c.h.b16 %v379
  %v912 = vunpack.c.l.b16 %v380
  %v913 = vunpack.c.h.b16 %v380
  %v914 = vunpack.c.l.b16 %v381
  %v915 = vunpack.c.h.b16 %v381
  %v916 = vunpack.c.l.b16 %v382
  %v917 = vunpack.c.h.b16 %v382
  %v918 = vunpack.c.l.b16 %v383
  %v919 = vunpack.c.h.b16 %v383
  %v920 = vunpack.c.l.b16 %v384
  %v921 = vunpack.c.h.b16 %v384
  %v922 = vunpack.c.l.b16 %v385
  %v923 = vunpack.c.h.b16 %v385
  %v924 = vunpack.c.l.b16 %v386
  %v925 = vunpack.c.h.b16 %v386
  %v926 = vunpack.c.l.b16 %v387
  %v927 = vunpack.c.h.b16 %v387
  %v928 = vunpack.c.l.b16 %v388
  %v929 = vunpack.c.h.b16 %v388
  %v930 = vunpack.c.l.b16 %v389
  %v931 = vunpack.c.h.b16 %v389
  %v932 = vpack.c.b16 %v878, %v876
  %v933 = vpack.c.b16 %v879, %v877
  %v934 = vpack.c.b16 %v882, %v880
  %v935 = vpack.c.b16 %v883, %v881
  %v936 = vpack.c.b16 %v886, %v884
  %v937 = vpack.c.b16 %v887, %v885
  %v938 = vpack.c.b16 %v890, %v888
  %v939 = vpack.c.b16 %v891, %v889
  %v940 = vpack.c.b16 %v894, %v892
  %v941 = vpack.c.b16 %v895, %v893
  %v942 = vpack.c.b16 %v898, %v896
  %v943 = vpack.c.b16 %v899, %v897
  %v944 = vpack.c.b16 %v902, %v900
  %v945 = vpack.c.b16 %v903, %v901
  %v946 = vpack.c.b16 %v906, %v904
  %v947 = vpack.c.b16 %v907, %v905
  %v948 = vpack.c.b16 %v910, %v908
  %v949 = vpack.c.b16 %v911, %v909
  %v950 = vpack.c.b16 %v914, %v912
  %v951 = vpack.c.b16 %v915, %v913
  %v952 = vpack.c.b16 %v918, %v916
  %v953 = vpack.c.b16 %v919, %v917
  %v954 = vpack.c.b16 %v922, %v920
  %v955 = vpack.c.b16 %v923, %v921
  %v956 = vpack.c.b16 %v926, %v924
  %v957 = vpack.c.b16 %v927, %v925
  %v958 = vpack.c.b16 %v930, %v928
  %v959 = vpack.c.b16 %v931, %v929
  %v988 = vsel %vm571, %v359, 0
  %v990 = vsel %vm571, %v361, 0
  %992 = vmatprep.subr.bf16.mxu0 %v933
  %993 = vmatpush1.bf16.msra.mxu0 %v932
  %994 = vmatprep.subr.bf16.mxu0 %v935
  %995 = vmatpush1.bf16.msra.mxu0 %v934
  %996 = vmatprep.subr.bf16.mxu0 %v937
  %997 = vmatpush1.bf16.msra.mxu0 %v936
  %998 = vmatprep.subr.bf16.mxu0 %v939
  %999 = vmatpush1.bf16.msra.mxu0 %v938
  %1000 = vmatprep.subr.bf16.mxu0 %v941
  %1001 = vmatpush1.bf16.msra.mxu0 %v940
  %1002 = vmatprep.subr.bf16.mxu0 %v943
  %1003 = vmatpush1.bf16.msra.mxu0 %v942
  %1004 = vmatprep.subr.bf16.mxu0 %v945
  %1005 = vmatpush1.bf16.msra.mxu0 %v944
  %1006 = vmatprep.subr.bf16.mxu0 %v947
  %1007 = vmatpush1.bf16.msra.mxu0 %v946
  %1008 = vmatprep.subr.bf16.mxu0 %v949
  %1009 = vmatpush1.bf16.msra.mxu0 %v948
  %1010 = vmatprep.subr.bf16.mxu0 %v951
  %1011 = vmatpush1.bf16.msra.mxu0 %v950
  %1012 = vmatprep.subr.bf16.mxu0 %v953
  %1013 = vmatpush1.bf16.msra.mxu0 %v952
  %1014 = vmatprep.subr.bf16.mxu0 %v955
  %1015 = vmatpush1.bf16.msra.mxu0 %v954
  %1016 = vmatprep.subr.bf16.mxu0 %v957
  %1017 = vmatpush1.bf16.msra.mxu0 %v956
  %1018 = vmatprep.subr.bf16.mxu0 %v959
  %1019 = vmatpush1.bf16.msra.mxu0 %v958
  %1020 = vmatprep.subr.bf16.mxu0 0
  %1021 = vmatpush1.bf16.msra.mxu0 0
  %1022 = vmatprep.subr.bf16.mxu0 0
  %1023 = vmatpush1.bf16.msra.mxu0 0
  %1024 = vmatprep.mubr.f32.mxu0 %v988
  %1025 = vmatmul.mubr.f32.gmra.mrb[0].mxu0 %v358
  %v1026 = vpop.f32.mrb[0].mxu0
  %v1027 = vadd.f32 %v611, %v1026
  %v1028 = vpop.f32.mrb[0].mxu0
  %v1029 = vadd.f32 %v613, %v1028
  %1030 = vmatprep.mubr.f32.mxu0 %v990
  %1031 = vmatmul.mubr.f32.gmra.mrb[0].mxu0 %v360
  %v1032 = vpop.f32.mrb[0].mxu0
  %v1033 = vadd.f32 %v617, %v1032
  %v1034 = vpop.f32.mrb[0].mxu0
  %v1035 = vadd.f32 %v619, %v1034
  %1036 = vdwg.mxu0
  %v1037 = vadd.f32 %v1027, %v838
  %v1038 = vadd.f32 %v1029, %v840
  %v1039 = vadd.f32 %v1033, %v844
  %v1040 = vadd.f32 %v1035, %v846
  %s1041 = scalar_lea.vmem %s5, 1
  %v1042 = vld [vmem:[%s1041] ss:$8 sm:$0x3]
  %v1044 = vlaneseq
  %v1045 = vshrl.u32 %v1044, 7
  %v1046 = vsub.s32 0, %v1045
  %v1047 = vrot.slane %v1042, %v1046
  %v1048 = vlaneseq
  %v1049 = vshrl.u32 %v1048, 7
  %v1050 = vsub.s32 1, %v1049
  %v1051 = vrot.slane %v1042, %v1050
  %v1054 = vadd.f32 %v1037, %v1047
  %v1055 = vadd.f32 %v1038, %v1051
  %v1056 = vadd.f32 %v1039, %v1047
  %v1057 = vadd.f32 %v1040, %v1051
  %v1058 = vmax.f32 %v1054, 0.0
  %v1059 = vmax.f32 %v1055, 0.0
  %v1060 = vmax.f32 %v1056, 0.0
  %v1061 = vmax.f32 %v1057, 0.0
  %v1062 = vld [vmem:[%s4] sm:$0xf]
  %v1063 = vld [vmem:[%s4 + $0x4] sm:$0xf]
  %v1064 = vld [vmem:[%s4 + $0x8] sm:$0xf]
  %v1065 = vld [vmem:[%s4 + $0xc] sm:$0xf]
  %v1066 = vld [vmem:[%s4 + $0x10] sm:$0xf]
  %v1067 = vld [vmem:[%s4 + $0x14] sm:$0xf]
  %v1068 = vld [vmem:[%s4 + $0x18] sm:$0xf]
  %v1069 = vld [vmem:[%s4 + $0x1c] sm:$0xf]
  %v1070 = vld [vmem:[%s4 + $0x20] sm:$0xf]
  %v1071 = vld [vmem:[%s4 + $0x24] sm:$0xf]
  %v1072 = vld [vmem:[%s4 + $0x28] sm:$0xf]
  %v1073 = vld [vmem:[%s4 + $0x2c] sm:$0xf]
  %v1074 = vld [vmem:[%s4 + $0x30] sm:$0xf]
  %v1075 = vld [vmem:[%s4 + $0x34] sm:$0xf]
  %v1076 = vld [vmem:[%s4 + $0x38] sm:$0xf]
  %v1077 = vld [vmem:[%s4 + $0x3c] sm:$0xf]
  %v1078 = vld [vmem:[%s4 + $0x40] sm:$0xf]
  %v1079 = vld [vmem:[%s4 + $0x44] sm:$0xf]
  %v1080 = vld [vmem:[%s4 + $0x48] sm:$0xf]
  %v1081 = vld [vmem:[%s4 + $0x4c] sm:$0xf]
  %s1082 = scalar_lea.vmem %s4, 80
  %v1083 = vld [vmem:[%s1082] sm:$0xf]
  %v1084 = vld [vmem:[%s1082 + $0x4] sm:$0xf]
  %v1085 = vld [vmem:[%s1082 + $0x8] sm:$0xf]
  %v1086 = vld [vmem:[%s1082 + $0xc] sm:$0xf]
  %v1087 = vld [vmem:[%s1082 + $0x10] sm:$0xf]
  %v1088 = vld [vmem:[%s1082 + $0x14] sm:$0xf]
  %v1089 = vld [vmem:[%s1082 + $0x18] sm:$0xf]
  %v1090 = vld [vmem:[%s1082 + $0x1c] sm:$0xf]
  %v1091 = vld [vmem:[%s1082 + $0x20] sm:$0xf]
  %v1092 = vld [vmem:[%s1082 + $0x24] sm:$0xf]
  %v1093 = vld [vmem:[%s1082 + $0x28] sm:$0xf]
  %v1094 = vld [vmem:[%s1082 + $0x2c] sm:$0xf]
  %v1095 = vld [vmem:[%s1082 + $0x30] sm:$0xf]
  %v1096 = vld [vmem:[%s1082 + $0x34] sm:$0xf]
  %v1097 = vld [vmem:[%s1082 + $0x38] sm:$0xf]
  %v1098 = vld [vmem:[%s1082 + $0x3c] sm:$0xf]
  %v1099 = vld [vmem:[%s1082 + $0x40] sm:$0xf]
  %v1100 = vld [vmem:[%s1082 + $0x44] sm:$0xf]
  %v1101 = vld [vmem:[%s1082 + $0x48] sm:$0xf]
  %v1102 = vld [vmem:[%s1082 + $0x4c] sm:$0xf]
  %v1107 = vrot.slane %v1058, 1
  %v1108 = vrot.slane %v1060, 1
  %v1109 = vsel %vm241, %v1107, %v1108
  %v1110 = vrot.slane %v1059, 1
  %v1111 = vrot.slane %v1061, 1
  %v1112 = vsel %vm241, %v1110, %v1111
  %v1135 = vunpack.c.l.b16 %v1083
  %v1136 = vunpack.c.l.b16 %v1084
  %v1137 = vunpack.c.l.b16 %v1085
  %v1138 = vunpack.c.l.b16 %v1086
  %v1139 = vunpack.c.l.b16 %v1087
  %v1140 = vunpack.c.l.b16 %v1088
  %v1141 = vunpack.c.l.b16 %v1089
  %v1142 = vunpack.c.l.b16 %v1090
  %v1143 = vunpack.c.l.b16 %v1091
  %v1144 = vunpack.c.l.b16 %v1092
  %v1145 = vunpack.c.l.b16 %v1093
  %v1146 = vunpack.c.l.b16 %v1094
  %v1147 = vunpack.c.l.b16 %v1095
  %v1148 = vunpack.c.l.b16 %v1096
  %v1149 = vunpack.c.l.b16 %v1097
  %v1150 = vunpack.c.l.b16 %v1098
  %v1151 = vunpack.c.l.b16 %v1099
  %v1152 = vunpack.c.l.b16 %v1100
  %v1153 = vunpack.c.l.b16 %v1101
  %v1154 = vunpack.c.l.b16 %v1102
  %v1155 = vpack.c.b16 %v1136, %v1135
  %v1156 = vpack.c.b16 %v1138, %v1137
  %v1157 = vpack.c.b16 %v1140, %v1139
  %v1158 = vpack.c.b16 %v1142, %v1141
  %v1159 = vpack.c.b16 %v1144, %v1143
  %v1160 = vpack.c.b16 %v1146, %v1145
  %v1161 = vpack.c.b16 %v1148, %v1147
  %v1162 = vpack.c.b16 %v1150, %v1149
  %v1163 = vpack.c.b16 %v1152, %v1151
  %v1164 = vpack.c.b16 %v1154, %v1153
  %vm1175 = vcmask 261120
  %v1176 = vsel %vm1175, %v1112, 0
  %v1178 = vsel %vm1175, %v1111, 0
  %1180 = vmatprep.subr.bf16.mxu0 0
  %1181 = vmatpush1.bf16.msra.mxu0 %v1155
  %1182 = vmatprep.subr.bf16.mxu0 0
  %1183 = vmatpush1.bf16.msra.mxu0 %v1156
  %1184 = vmatprep.subr.bf16.mxu0 0
  %1185 = vmatpush1.bf16.msra.mxu0 %v1157
  %1186 = vmatprep.subr.bf16.mxu0 0
  %1187 = vmatpush1.bf16.msra.mxu0 %v1158
  %1188 = vmatprep.subr.bf16.mxu0 0
  %1189 = vmatpush1.bf16.msra.mxu0 %v1159
  %1190 = vmatprep.subr.bf16.mxu0 0
  %1191 = vmatpush1.bf16.msra.mxu0 %v1160
  %1192 = vmatprep.subr.bf16.mxu0 0
  %1193 = vmatpush1.bf16.msra.mxu0 %v1161
  %1194 = vmatprep.subr.bf16.mxu0 0
  %1195 = vmatpush1.bf16.msra.mxu0 %v1162
  %1196 = vmatprep.subr.bf16.mxu0 0
  %1197 = vmatpush1.bf16.msra.mxu0 %v1163
  %1198 = vmatprep.subr.bf16.mxu0 0
  %1199 = vmatpush1.bf16.msra.mxu0 %v1164
  %1200 = vmatprep.subr.bf16.mxu0 0
  %1201 = vmatpush1.bf16.msra.mxu0 0
  %1202 = vmatprep.subr.bf16.mxu0 0
  %1203 = vmatpush1.bf16.msra.mxu0 0
  %1204 = vmatprep.subr.bf16.mxu0 0
  %1205 = vmatpush1.bf16.msra.mxu0 0
  %1206 = vmatprep.subr.bf16.mxu0 0
  %1207 = vmatpush1.bf16.msra.mxu0 0
  %1208 = vmatprep.subr.bf16.mxu0 0
  %1209 = vmatpush1.bf16.msra.mxu0 0
  %1210 = vmatprep.subr.bf16.mxu0 0
  %1211 = vmatpush1.bf16.msra.mxu0 0
  %1212 = vmatprep.mubr.f32.mxu0 %v1176
  %1213 = vmatmul.mubr.f32.gmra.mrb[0].mxu0 %v1109
  %v1214 = vpop.f32.mrb[0].mxu0
  %v1215 = vadd.f32 0.0, %v1214
  %v1216 = vpop.f32.mrb[0].mxu0
  %1217 = vmatprep.mubr.f32.mxu0 %v1178
  %1218 = vmatmul.mubr.f32.gmra.mrb[0].mxu0 %v1108
  %v1219 = vpop.f32.mrb[0].mxu0
  %v1220 = vadd.f32 0.0, %v1219
  %v1221 = vpop.f32.mrb[0].mxu0
  %1222 = vdwg.mxu0
  %s1223 = scalar_lea.vmem %s4, 160
  %v1224 = vld [vmem:[%s1223] sm:$0xf]
  %v1225 = vld [vmem:[%s1223 + $0x4] sm:$0xf]
  %v1226 = vld [vmem:[%s1223 + $0x8] sm:$0xf]
  %v1227 = vld [vmem:[%s1223 + $0xc] sm:$0xf]
  %v1228 = vld [vmem:[%s1223 + $0x10] sm:$0xf]
  %v1229 = vld [vmem:[%s1223 + $0x14] sm:$0xf]
  %v1230 = vld [vmem:[%s1223 + $0x18] sm:$0xf]
  %v1231 = vld [vmem:[%s1223 + $0x1c] sm:$0xf]
  %v1232 = vld [vmem:[%s1223 + $0x20] sm:$0xf]
  %v1233 = vld [vmem:[%s1223 + $0x24] sm:$0xf]
  %v1234 = vld [vmem:[%s1223 + $0x28] sm:$0xf]
  %v1235 = vld [vmem:[%s1223 + $0x2c] sm:$0xf]
  %v1236 = vld [vmem:[%s1223 + $0x30] sm:$0xf]
  %v1237 = vld [vmem:[%s1223 + $0x34] sm:$0xf]
  %v1238 = vld [vmem:[%s1223 + $0x38] sm:$0xf]
  %v1239 = vld [vmem:[%s1223 + $0x3c] sm:$0xf]
  %v1240 = vld [vmem:[%s1223 + $0x40] sm:$0xf]
  %v1241 = vld [vmem:[%s1223 + $0x44] sm:$0xf]
  %v1242 = vld [vmem:[%s1223 + $0x48] sm:$0xf]
  %v1243 = vld [vmem:[%s1223 + $0x4c] sm:$0xf]
  %s1244 = scalar_lea.vmem %s4, 240
  %v1245 = vld [vmem:[%s1244] sm:$0xf]
  %v1246 = vld [vmem:[%s1244 + $0x4] sm:$0xf]
  %v1247 = vld [vmem:[%s1244 + $0x8] sm:$0xf]
  %v1248 = vld [vmem:[%s1244 + $0xc] sm:$0xf]
  %v1249 = vld [vmem:[%s1244 + $0x10] sm:$0xf]
  %v1250 = vld [vmem:[%s1244 + $0x14] sm:$0xf]
  %v1251 = vld [vmem:[%s1244 + $0x18] sm:$0xf]
  %v1252 = vld [vmem:[%s1244 + $0x1c] sm:$0xf]
  %v1253 = vld [vmem:[%s1244 + $0x20] sm:$0xf]
  %v1254 = vld [vmem:[%s1244 + $0x24] sm:$0xf]
  %v1255 = vld [vmem:[%s1244 + $0x28] sm:$0xf]
  %v1256 = vld [vmem:[%s1244 + $0x2c] sm:$0xf]
  %v1257 = vld [vmem:[%s1244 + $0x30] sm:$0xf]
  %v1258 = vld [vmem:[%s1244 + $0x34] sm:$0xf]
  %v1259 = vld [vmem:[%s1244 + $0x38] sm:$0xf]
  %v1260 = vld [vmem:[%s1244 + $0x3c] sm:$0xf]
  %v1261 = vld [vmem:[%s1244 + $0x40] sm:$0xf]
  %v1262 = vld [vmem:[%s1244 + $0x44] sm:$0xf]
  %v1263 = vld [vmem:[%s1244 + $0x48] sm:$0xf]
  %v1264 = vld [vmem:[%s1244 + $0x4c] sm:$0xf]
  %vm1265 = vcmask 1044480
  %v1266 = vrot.slane %v1058, 3
  %v1267 = vrot.slane %v1060, 3
  %v1268 = vsel %vm1265, %v1266, %v1267
  %v1269 = vrot.slane %v1059, 3
  %v1270 = vrot.slane %v1061, 3
  %v1271 = vsel %vm1265, %v1269, %v1270
  %v1294 = vunpack.c.l.b16 %v1245
  %v1295 = vunpack.c.l.b16 %v1246
  %v1296 = vunpack.c.l.b16 %v1247
  %v1297 = vunpack.c.l.b16 %v1248
  %v1298 = vunpack.c.l.b16 %v1249
  %v1299 = vunpack.c.l.b16 %v1250
  %v1300 = vunpack.c.l.b16 %v1251
  %v1301 = vunpack.c.l.b16 %v1252
  %v1302 = vunpack.c.l.b16 %v1253
  %v1303 = vunpack.c.l.b16 %v1254
  %v1304 = vunpack.c.l.b16 %v1255
  %v1305 = vunpack.c.l.b16 %v1256
  %v1306 = vunpack.c.l.b16 %v1257
  %v1307 = vunpack.c.l.b16 %v1258
  %v1308 = vunpack.c.l.b16 %v1259
  %v1309 = vunpack.c.l.b16 %v1260
  %v1310 = vunpack.c.l.b16 %v1261
  %v1311 = vunpack.c.l.b16 %v1262
  %v1312 = vunpack.c.l.b16 %v1263
  %v1313 = vunpack.c.l.b16 %v1264
  %v1314 = vpack.c.b16 %v1295, %v1294
  %v1315 = vpack.c.b16 %v1297, %v1296
  %v1316 = vpack.c.b16 %v1299, %v1298
  %v1317 = vpack.c.b16 %v1301, %v1300
  %v1318 = vpack.c.b16 %v1303, %v1302
  %v1319 = vpack.c.b16 %v1305, %v1304
  %v1320 = vpack.c.b16 %v1307, %v1306
  %v1321 = vpack.c.b16 %v1309, %v1308
  %v1322 = vpack.c.b16 %v1311, %v1310
  %v1323 = vpack.c.b16 %v1313, %v1312
  %v1334 = vsel %vm1175, %v1271, 0
  %v1336 = vsel %vm1175, %v1270, 0
  %1338 = vmatprep.subr.bf16.mxu0 0
  %1339 = vmatpush1.bf16.msra.mxu0 %v1314
  %1340 = vmatprep.subr.bf16.mxu0 0
  %1341 = vmatpush1.bf16.msra.mxu0 %v1315
  %1342 = vmatprep.subr.bf16.mxu0 0
  %1343 = vmatpush1.bf16.msra.mxu0 %v1316
  %1344 = vmatprep.subr.bf16.mxu0 0
  %1345 = vmatpush1.bf16.msra.mxu0 %v1317
  %1346 = vmatprep.subr.bf16.mxu0 0
  %1347 = vmatpush1.bf16.msra.mxu0 %v1318
  %1348 = vmatprep.subr.bf16.mxu0 0
  %1349 = vmatpush1.bf16.msra.mxu0 %v1319
  %1350 = vmatprep.subr.bf16.mxu0 0
  %1351 = vmatpush1.bf16.msra.mxu0 %v1320
  %1352 = vmatprep.subr.bf16.mxu0 0
  %1353 = vmatpush1.bf16.msra.mxu0 %v1321
  %1354 = vmatprep.subr.bf16.mxu0 0
  %1355 = vmatpush1.bf16.msra.mxu0 %v1322
  %1356 = vmatprep.subr.bf16.mxu0 0
  %1357 = vmatpush1.bf16.msra.mxu0 %v1323
  %1358 = vmatprep.subr.bf16.mxu0 0
  %1359 = vmatpush1.bf16.msra.mxu0 0
  %1360 = vmatprep.subr.bf16.mxu0 0
  %1361 = vmatpush1.bf16.msra.mxu0 0
  %1362 = vmatprep.subr.bf16.mxu0 0
  %1363 = vmatpush1.bf16.msra.mxu0 0
  %1364 = vmatprep.subr.bf16.mxu0 0
  %1365 = vmatpush1.bf16.msra.mxu0 0
  %1366 = vmatprep.subr.bf16.mxu0 0
  %1367 = vmatpush1.bf16.msra.mxu0 0
  %1368 = vmatprep.subr.bf16.mxu0 0
  %1369 = vmatpush1.bf16.msra.mxu0 0
  %1370 = vmatprep.mubr.f32.mxu0 %v1334
  %1371 = vmatmul.mubr.f32.gmra.mrb[0].mxu0 %v1268
  %v1372 = vpop.f32.mrb[0].mxu0
  %v1373 = vadd.f32 0.0, %v1372
  %v1374 = vpop.f32.mrb[0].mxu0
  %1375 = vmatprep.mubr.f32.mxu0 %v1336
  %1376 = vmatmul.mubr.f32.gmra.mrb[0].mxu0 %v1267
  %v1377 = vpop.f32.mrb[0].mxu0
  %v1378 = vadd.f32 0.0, %v1377
  %v1379 = vpop.f32.mrb[0].mxu0
  %1380 = vdwg.mxu0
  %s1381 = scalar_lea.vmem %s4, 320
  %v1382 = vld [vmem:[%s1381] sm:$0xf]
  %v1383 = vld [vmem:[%s1381 + $0x4] sm:$0xf]
  %v1384 = vld [vmem:[%s1381 + $0x8] sm:$0xf]
  %v1385 = vld [vmem:[%s1381 + $0xc] sm:$0xf]
  %v1386 = vld [vmem:[%s1381 + $0x10] sm:$0xf]
  %v1387 = vld [vmem:[%s1381 + $0x14] sm:$0xf]
  %v1388 = vld [vmem:[%s1381 + $0x18] sm:$0xf]
  %v1389 = vld [vmem:[%s1381 + $0x1c] sm:$0xf]
  %v1390 = vld [vmem:[%s1381 + $0x20] sm:$0xf]
  %v1391 = vld [vmem:[%s1381 + $0x24] sm:$0xf]
  %v1392 = vld [vmem:[%s1381 + $0x28] sm:$0xf]
  %v1393 = vld [vmem:[%s1381 + $0x2c] sm:$0xf]
  %v1394 = vld [vmem:[%s1381 + $0x30] sm:$0xf]
  %v1395 = vld [vmem:[%s1381 + $0x34] sm:$0xf]
  %v1396 = vld [vmem:[%s1381 + $0x38] sm:$0xf]
  %v1397 = vld [vmem:[%s1381 + $0x3c] sm:$0xf]
  %v1398 = vld [vmem:[%s1381 + $0x40] sm:$0xf]
  %v1399 = vld [vmem:[%s1381 + $0x44] sm:$0xf]
  %v1400 = vld [vmem:[%s1381 + $0x48] sm:$0xf]
  %v1401 = vld [vmem:[%s1381 + $0x4c] sm:$0xf]
  %vm1402 = vcmask 1043456
  %v1403 = vrot.slane %v1058, 4
  %v1404 = vrot.slane %v1060, 4
  %v1405 = vsel %vm1402, %v1403, %v1404
  %v1406 = vrot.slane %v1059, 4
  %v1407 = vrot.slane %v1061, 4
  %v1408 = vsel %vm1402, %v1406, %v1407
  %v1431 = vunpack.c.l.b16 %v1382
  %v1432 = vunpack.c.l.b16 %v1383
  %v1433 = vunpack.c.l.b16 %v1384
  %v1434 = vunpack.c.l.b16 %v1385
  %v1435 = vunpack.c.l.b16 %v1386
  %v1436 = vunpack.c.l.b16 %v1387
  %v1437 = vunpack.c.l.b16 %v1388
  %v1438 = vunpack.c.l.b16 %v1389
  %v1439 = vunpack.c.l.b16 %v1390
  %v1440 = vunpack.c.l.b16 %v1391
  %v1441 = vunpack.c.l.b16 %v1392
  %v1442 = vunpack.c.l.b16 %v1393
  %v1443 = vunpack.c.l.b16 %v1394
  %v1444 = vunpack.c.l.b16 %v1395
  %v1445 = vunpack.c.l.b16 %v1396
  %v1446 = vunpack.c.l.b16 %v1397
  %v1447 = vunpack.c.l.b16 %v1398
  %v1448 = vunpack.c.l.b16 %v1399
  %v1449 = vunpack.c.l.b16 %v1400
  %v1450 = vunpack.c.l.b16 %v1401
  %v1451 = vpack.c.b16 %v1432, %v1431
  %v1452 = vpack.c.b16 %v1434, %v1433
  %v1453 = vpack.c.b16 %v1436, %v1435
  %v1454 = vpack.c.b16 %v1438, %v1437
  %v1455 = vpack.c.b16 %v1440, %v1439
  %v1456 = vpack.c.b16 %v1442, %v1441
  %v1457 = vpack.c.b16 %v1444, %v1443
  %v1458 = vpack.c.b16 %v1446, %v1445
  %v1459 = vpack.c.b16 %v1448, %v1447
  %v1460 = vpack.c.b16 %v1450, %v1449
  %v1471 = vsel %vm1175, %v1408, 0
  %v1473 = vsel %vm1175, %v1407, 0
  %1475 = vmatprep.subr.bf16.mxu0 0
  %1476 = vmatpush1.bf16.msra.mxu0 %v1451
  %1477 = vmatprep.subr.bf16.mxu0 0
  %1478 = vmatpush1.bf16.msra.mxu0 %v1452
  %1479 = vmatprep.subr.bf16.mxu0 0
  %1480 = vmatpush1.bf16.msra.mxu0 %v1453
  %1481 = vmatprep.subr.bf16.mxu0 0
  %1482 = vmatpush1.bf16.msra.mxu0 %v1454
  %1483 = vmatprep.subr.bf16.mxu0 0
  %1484 = vmatpush1.bf16.msra.mxu0 %v1455
  %1485 = vmatprep.subr.bf16.mxu0 0
  %1486 = vmatpush1.bf16.msra.mxu0 %v1456
  %1487 = vmatprep.subr.bf16.mxu0 0
  %1488 = vmatpush1.bf16.msra.mxu0 %v1457
  %1489 = vmatprep.subr.bf16.mxu0 0
  %1490 = vmatpush1.bf16.msra.mxu0 %v1458
  %1491 = vmatprep.subr.bf16.mxu0 0
  %1492 = vmatpush1.bf16.msra.mxu0 %v1459
  %1493 = vmatprep.subr.bf16.mxu0 0
  %1494 = vmatpush1.bf16.msra.mxu0 %v1460
  %1495 = vmatprep.subr.bf16.mxu0 0
  %1496 = vmatpush1.bf16.msra.mxu0 0
  %1497 = vmatprep.subr.bf16.mxu0 0
  %1498 = vmatpush1.bf16.msra.mxu0 0
  %1499 = vmatprep.subr.bf16.mxu0 0
  %1500 = vmatpush1.bf16.msra.mxu0 0
  %1501 = vmatprep.subr.bf16.mxu0 0
  %1502 = vmatpush1.bf16.msra.mxu0 0
  %1503 = vmatprep.subr.bf16.mxu0 0
  %1504 = vmatpush1.bf16.msra.mxu0 0
  %1505 = vmatprep.subr.bf16.mxu0 0
  %1506 = vmatpush1.bf16.msra.mxu0 0
  %1507 = vmatprep.mubr.f32.mxu0 %v1471
  %1508 = vmatmul.mubr.f32.gmra.mrb[0].mxu0 %v1405
  %v1509 = vpop.f32.mrb[0].mxu0
  %v1510 = vadd.f32 0.0, %v1509
  %v1511 = vpop.f32.mrb[0].mxu0
  %1512 = vmatprep.mubr.f32.mxu0 %v1473
  %1513 = vmatmul.mubr.f32.gmra.mrb[0].mxu0 %v1404
  %v1514 = vpop.f32.mrb[0].mxu0
  %v1515 = vadd.f32 0.0, %v1514
  %v1516 = vpop.f32.mrb[0].mxu0
  %1517 = vdwg.mxu0
  %v1538 = vunpack.c.l.b16 %v1062
  %v1539 = vunpack.c.l.b16 %v1063
  %v1540 = vunpack.c.l.b16 %v1064
  %v1541 = vunpack.c.l.b16 %v1065
  %v1542 = vunpack.c.l.b16 %v1066
  %v1543 = vunpack.c.l.b16 %v1067
  %v1544 = vunpack.c.l.b16 %v1068
  %v1545 = vunpack.c.l.b16 %v1069
  %v1546 = vunpack.c.l.b16 %v1070
  %v1547 = vunpack.c.l.b16 %v1071
  %v1548 = vunpack.c.l.b16 %v1072
  %v1549 = vunpack.c.l.b16 %v1073
  %v1550 = vunpack.c.l.b16 %v1074
  %v1551 = vunpack.c.l.b16 %v1075
  %v1552 = vunpack.c.l.b16 %v1076
  %v1553 = vunpack.c.l.b16 %v1077
  %v1554 = vunpack.c.l.b16 %v1078
  %v1555 = vunpack.c.l.b16 %v1079
  %v1556 = vunpack.c.l.b16 %v1080
  %v1557 = vunpack.c.l.b16 %v1081
  %v1558 = vpack.c.b16 %v1539, %v1538
  %v1559 = vpack.c.b16 %v1541, %v1540
  %v1560 = vpack.c.b16 %v1543, %v1542
  %v1561 = vpack.c.b16 %v1545, %v1544
  %v1562 = vpack.c.b16 %v1547, %v1546
  %v1563 = vpack.c.b16 %v1549, %v1548
  %v1564 = vpack.c.b16 %v1551, %v1550
  %v1565 = vpack.c.b16 %v1553, %v1552
  %v1566 = vpack.c.b16 %v1555, %v1554
  %v1567 = vpack.c.b16 %v1557, %v1556
  %v1578 = vsel %vm1175, %v1059, 0
  %v1580 = vsel %vm1175, %v1061, 0
  %1582 = vmatprep.subr.bf16.mxu0 0
  %1583 = vmatpush1.bf16.msra.mxu0 %v1558
  %1584 = vmatprep.subr.bf16.mxu0 0
  %1585 = vmatpush1.bf16.msra.mxu0 %v1559
  %1586 = vmatprep.subr.bf16.mxu0 0
  %1587 = vmatpush1.bf16.msra.mxu0 %v1560
  %1588 = vmatprep.subr.bf16.mxu0 0
  %1589 = vmatpush1.bf16.msra.mxu0 %v1561
  %1590 = vmatprep.subr.bf16.mxu0 0
  %1591 = vmatpush1.bf16.msra.mxu0 %v1562
  %1592 = vmatprep.subr.bf16.mxu0 0
  %1593 = vmatpush1.bf16.msra.mxu0 %v1563
  %1594 = vmatprep.subr.bf16.mxu0 0
  %1595 = vmatpush1.bf16.msra.mxu0 %v1564
  %1596 = vmatprep.subr.bf16.mxu0 0
  %1597 = vmatpush1.bf16.msra.mxu0 %v1565
  %1598 = vmatprep.subr.bf16.mxu0 0
  %1599 = vmatpush1.bf16.msra.mxu0 %v1566
  %1600 = vmatprep.subr.bf16.mxu0 0
  %1601 = vmatpush1.bf16.msra.mxu0 %v1567
  %1602 = vmatprep.subr.bf16.mxu0 0
  %1603 = vmatpush1.bf16.msra.mxu0 0
  %1604 = vmatprep.subr.bf16.mxu0 0
  %1605 = vmatpush1.bf16.msra.mxu0 0
  %1606 = vmatprep.subr.bf16.mxu0 0
  %1607 = vmatpush1.bf16.msra.mxu0 0
  %1608 = vmatprep.subr.bf16.mxu0 0
  %1609 = vmatpush1.bf16.msra.mxu0 0
  %1610 = vmatprep.subr.bf16.mxu0 0
  %1611 = vmatpush1.bf16.msra.mxu0 0
  %1612 = vmatprep.subr.bf16.mxu0 0
  %1613 = vmatpush1.bf16.msra.mxu0 0
  %1614 = vmatprep.mubr.f32.mxu0 %v1578
  %1615 = vmatmul.mubr.f32.gmra.mrb[0].mxu0 %v1058
  %v1616 = vpop.f32.mrb[0].mxu0
  %v1617 = vadd.f32 %v1215, %v1616
  %v1618 = vpop.f32.mrb[0].mxu0
  %1619 = vmatprep.mubr.f32.mxu0 %v1580
  %1620 = vmatmul.mubr.f32.gmra.mrb[0].mxu0 %v1060
  %v1621 = vpop.f32.mrb[0].mxu0
  %v1622 = vadd.f32 %v1220, %v1621
  %v1623 = vpop.f32.mrb[0].mxu0
  %1624 = vdwg.mxu0
  %v1625 = vrot.slane %v1058, 2
  %v1626 = vrot.slane %v1060, 2
  %v1627 = vsel %vm650, %v1625, %v1626
  %v1628 = vrot.slane %v1059, 2
  %v1629 = vrot.slane %v1061, 2
  %v1630 = vsel %vm650, %v1628, %v1629
  %v1653 = vunpack.c.l.b16 %v1224
  %v1654 = vunpack.c.l.b16 %v1225
  %v1655 = vunpack.c.l.b16 %v1226
  %v1656 = vunpack.c.l.b16 %v1227
  %v1657 = vunpack.c.l.b16 %v1228
  %v1658 = vunpack.c.l.b16 %v1229
  %v1659 = vunpack.c.l.b16 %v1230
  %v1660 = vunpack.c.l.b16 %v1231
  %v1661 = vunpack.c.l.b16 %v1232
  %v1662 = vunpack.c.l.b16 %v1233
  %v1663 = vunpack.c.l.b16 %v1234
  %v1664 = vunpack.c.l.b16 %v1235
  %v1665 = vunpack.c.l.b16 %v1236
  %v1666 = vunpack.c.l.b16 %v1237
  %v1667 = vunpack.c.l.b16 %v1238
  %v1668 = vunpack.c.l.b16 %v1239
  %v1669 = vunpack.c.l.b16 %v1240
  %v1670 = vunpack.c.l.b16 %v1241
  %v1671 = vunpack.c.l.b16 %v1242
  %v1672 = vunpack.c.l.b16 %v1243
  %v1673 = vpack.c.b16 %v1654, %v1653
  %v1674 = vpack.c.b16 %v1656, %v1655
  %v1675 = vpack.c.b16 %v1658, %v1657
  %v1676 = vpack.c.b16 %v1660, %v1659
  %v1677 = vpack.c.b16 %v1662, %v1661
  %v1678 = vpack.c.b16 %v1664, %v1663
  %v1679 = vpack.c.b16 %v1666, %v1665
  %v1680 = vpack.c.b16 %v1668, %v1667
  %v1681 = vpack.c.b16 %v1670, %v1669
  %v1682 = vpack.c.b16 %v1672, %v1671
  %v1693 = vsel %vm1175, %v1630, 0
  %v1695 = vsel %vm1175, %v1629, 0
  %1697 = vmatprep.subr.bf16.mxu0 0
  %1698 = vmatpush1.bf16.msra.mxu0 %v1673
  %1699 = vmatprep.subr.bf16.mxu0 0
  %1700 = vmatpush1.bf16.msra.mxu0 %v1674
  %1701 = vmatprep.subr.bf16.mxu0 0
  %1702 = vmatpush1.bf16.msra.mxu0 %v1675
  %1703 = vmatprep.subr.bf16.mxu0 0
  %1704 = vmatpush1.bf16.msra.mxu0 %v1676
  %1705 = vmatprep.subr.bf16.mxu0 0
  %1706 = vmatpush1.bf16.msra.mxu0 %v1677
  %1707 = vmatprep.subr.bf16.mxu0 0
  %1708 = vmatpush1.bf16.msra.mxu0 %v1678
  %1709 = vmatprep.subr.bf16.mxu0 0
  %1710 = vmatpush1.bf16.msra.mxu0 %v1679
  %1711 = vmatprep.subr.bf16.mxu0 0
  %1712 = vmatpush1.bf16.msra.mxu0 %v1680
  %1713 = vmatprep.subr.bf16.mxu0 0
  %1714 = vmatpush1.bf16.msra.mxu0 %v1681
  %1715 = vmatprep.subr.bf16.mxu0 0
  %1716 = vmatpush1.bf16.msra.mxu0 %v1682
  %1717 = vmatprep.subr.bf16.mxu0 0
  %1718 = vmatpush1.bf16.msra.mxu0 0
  %1719 = vmatprep.subr.bf16.mxu0 0
  %1720 = vmatpush1.bf16.msra.mxu0 0
  %1721 = vmatprep.subr.bf16.mxu0 0
  %1722 = vmatpush1.bf16.msra.mxu0 0
  %1723 = vmatprep.subr.bf16.mxu0 0
  %1724 = vmatpush1.bf16.msra.mxu0 0
  %1725 = vmatprep.subr.bf16.mxu0 0
  %1726 = vmatpush1.bf16.msra.mxu0 0
  %1727 = vmatprep.subr.bf16.mxu0 0
  %1728 = vmatpush1.bf16.msra.mxu0 0
  %1729 = vmatprep.mubr.f32.mxu0 %v1693
  %1730 = vmatmul.mubr.f32.gmra.mrb[0].mxu0 %v1627
  %v1731 = vpop.f32.mrb[0].mxu0
  %v1732 = vadd.f32 %v1373, %v1731
  %v1733 = vpop.f32.mrb[0].mxu0
  %1734 = vmatprep.mubr.f32.mxu0 %v1695
  %1735 = vmatmul.mubr.f32.gmra.mrb[0].mxu0 %v1626
  %v1736 = vpop.f32.mrb[0].mxu0
  %v1737 = vadd.f32 %v1378, %v1736
  %v1738 = vpop.f32.mrb[0].mxu0
  %1739 = vdwg.mxu0
  %v1740 = vadd.f32 %v1617, %v1732
  %v1741 = vadd.f32 %v1622, %v1737
  %v1742 = vadd.f32 %v1740, %v1510
  %v1743 = vadd.f32 %v1741, %v1515
  %v1745 = vrot.slane %v1743, 7
  %vm1747 = vcmask 1040384
  %v1748 = vsel %vm1747, %v1742, %v1745
  %v1749 = vld [vmem:[%s5 + $0x2] ss:$0 sm:$0xff]
  %v1750 = vadd.f32 %v1748, %v1749
  %v1751 = vld [vmem:[%s5 + $0x5] ss:$0 sm:$0xff]
  %vm1752 = vcmask 517120
  %v1753 = vsel %vm1752, %v1750, 0.0
  %1754 = vadd.xlane.f32.xlu0 %v1753
  %v1755 = vpop.xlane.xlu0 %1754
  %v1756 = vmul.f32 %v1755, 0.02
  %v1757 = vsub.f32 %v1750, %v1756
  %v1758 = vmul.f32 %v1757, %v1751
  %v1759 = vmul.f32 %v1758, %v1758
  %v1760 = vsel %vm1752, %v1759, 0.0
  %1761 = vadd.xlane.f32.xlu0 %v1760
  %v1762 = vpop.xlane.xlu0 %1761
  %v1763 = vmul.f32 %v1762, 0.02
  %v1764 = vadd.f32 %v1763, 1e-05
  %v1765 = vrsqrt.pop %v1764
  %v1766 = vmul.f32 %v1758, %v1765
  %v1767 = vld [vmem:[%s5 + $0x3] ss:$0 sm:$0xff]
  %v1768 = vmul.f32 %v1766, %v1767
  %v1769 = vld [vmem:[%s5 + $0x4] ss:$0 sm:$0xff]
  %v1770 = vadd.f32 %v1768, %v1769
  %v1771 = vtanh.pop %v1770
  %v1772 = vld [vmem:[%s1] sm:$0x3]
  %v1773 = vadd.f32 %v1771, %v1772
  %v1774 = vld [vmem:[%s6] sm:$0xff]
  %v1775 = vld [vmem:[%s6 + $0x8] sm:$0xff]
  %v1776 = vld [vmem:[%s6 + $0x10] sm:$0xff]
  %v1777 = vld [vmem:[%s6 + $0x18] sm:$0xff]
  %v1778 = vld [vmem:[%s6 + $0x20] sm:$0xff]
  %v1779 = vld [vmem:[%s6 + $0x28] sm:$0xff]
  %v1780 = vld [vmem:[%s6 + $0x30] sm:$0xff]
  %v1781 = vld [vmem:[%s6 + $0x38] sm:$0xff]
  %v1782 = vld [vmem:[%s5 + $0x6] ss:$0 sm:$0xff]
  %v1784 = vsel %vm80, %v1773, 0
  %1786 = vmatprep.subr.mxu0 0.0
  %1787 = vmatpush1.msra.mxu0 %v1774
  %1788 = vmatprep.subr.mxu0 0.0
  %1789 = vmatpush1.msra.mxu0 %v1775
  %1790 = vmatprep.subr.mxu0 0.0
  %1791 = vmatpush1.msra.mxu0 %v1776
  %1792 = vmatprep.subr.mxu0 0.0
  %1793 = vmatpush1.msra.mxu0 %v1777
  %1794 = vmatprep.subr.mxu0 0.0
  %1795 = vmatpush1.msra.mxu0 %v1778
  %1796 = vmatprep.subr.mxu0 0.0
  %1797 = vmatpush1.msra.mxu0 %v1779
  %1798 = vmatprep.subr.mxu0 0.0
  %1799 = vmatpush1.msra.mxu0 %v1780
  %1800 = vmatprep.subr.mxu0 0.0
  %1801 = vmatpush1.msra.mxu0 %v1781
  %1802 = vmatprep.subr.mxu0 0.0
  %1803 = vmatpush1.msra.mxu0 0.0
  %1804 = vmatprep.subr.mxu0 0.0
  %1805 = vmatpush1.msra.mxu0 0.0
  %1806 = vmatprep.subr.mxu0 0.0
  %1807 = vmatpush1.msra.mxu0 0.0
  %1808 = vmatprep.subr.mxu0 0.0
  %1809 = vmatpush1.msra.mxu0 0.0
  %1810 = vmatprep.subr.mxu0 0.0
  %1811 = vmatpush1.msra.mxu0 0.0
  %1812 = vmatprep.subr.mxu0 0.0
  %1813 = vmatpush1.msra.mxu0 0.0
  %1814 = vmatprep.subr.mxu0 0.0
  %1815 = vmatpush1.msra.mxu0 0.0
  %1816 = vmatprep.subr.mxu0 0.0
  %1817 = vmatpush1.msra.mxu0 0.0
  %1818 = vmatprep.subr.mxu0 0.0
  %1819 = vmatpush1.msra.mxu0 0.0
  %1820 = vmatprep.subr.mxu0 0.0
  %1821 = vmatpush1.msra.mxu0 0.0
  %1822 = vmatprep.subr.mxu0 0.0
  %1823 = vmatpush1.msra.mxu0 0.0
  %1824 = vmatprep.subr.mxu0 0.0
  %1825 = vmatpush1.msra.mxu0 0.0
  %1826 = vmatprep.subr.mxu0 0.0
  %1827 = vmatpush1.msra.mxu0 0.0
  %1828 = vmatprep.subr.mxu0 0.0
  %1829 = vmatpush1.msra.mxu0 0.0
  %1830 = vmatprep.subr.mxu0 0.0
  %1831 = vmatpush1.msra.mxu0 0.0
  %1832 = vmatprep.subr.mxu0 0.0
  %1833 = vmatpush1.msra.mxu0 0.0
  %1834 = vmatprep.subr.mxu0 0.0
  %1835 = vmatpush1.msra.mxu0 0.0
  %1836 = vmatprep.subr.mxu0 0.0
  %1837 = vmatpush1.msra.mxu0 0.0
  %1838 = vmatprep.subr.mxu0 0.0
  %1839 = vmatpush1.msra.mxu0 0.0
  %1840 = vmatprep.subr.mxu0 0.0
  %1841 = vmatpush1.msra.mxu0 0.0
  %1842 = vmatprep.subr.mxu0 0.0
  %1843 = vmatpush1.msra.mxu0 0.0
  %1844 = vmatprep.subr.mxu0 0.0
  %1845 = vmatpush1.msra.mxu0 0.0
  %1846 = vmatprep.subr.mxu0 0.0
  %1847 = vmatpush1.msra.mxu0 0.0
  %1848 = vmatprep.subr.mxu0 0.0
  %1849 = vmatpush1.msra.mxu0 0.0
  %1850 = vmatprep.mubr.f32.mxu0 0.0
  %1851 = vmatmul.mubr.f32.gmra.mrb[0].mxu0 %v1784
  %v1852 = vpop.f32.mrb[0].mxu0
  %v1853 = vadd.f32 %v1782, %v1852
  %v1854 = vpop.f32.mrb[0].mxu0
  %1855 = vdwg.mxu0
  %v1856 = vmax.f32 %v1853, 0.0
  %v1857 = vld [vmem:[%s6 + $0x40] sm:$0xff]
  %v1858 = vld [vmem:[%s6 + $0x48] sm:$0xff]
  %v1859 = vld [vmem:[%s6 + $0x50] sm:$0xff]
  %v1860 = vld [vmem:[%s6 + $0x58] sm:$0xff]
  %v1861 = vld [vmem:[%s6 + $0x60] sm:$0xff]
  %v1862 = vld [vmem:[%s6 + $0x68] sm:$0xff]
  %v1863 = vld [vmem:[%s6 + $0x70] sm:$0xff]
  %v1864 = vld [vmem:[%s6 + $0x78] sm:$0xff]
  %v1865 = vld [vmem:[%s5 + $0x7] ss:$0 sm:$0xff]
  %v1867 = vsel %vm80, %v1856, 0
  %1869 = vmatprep.subr.mxu0 0.0
  %1870 = vmatpush1.msra.mxu0 %v1857
  %1871 = vmatprep.subr.mxu0 0.0
  %1872 = vmatpush1.msra.mxu0 %v1858
  %1873 = vmatprep.subr.mxu0 0.0
  %1874 = vmatpush1.msra.mxu0 %v1859
  %1875 = vmatprep.subr.mxu0 0.0
  %1876 = vmatpush1.msra.mxu0 %v1860
  %1877 = vmatprep.subr.mxu0 0.0
  %1878 = vmatpush1.msra.mxu0 %v1861
  %1879 = vmatprep.subr.mxu0 0.0
  %1880 = vmatpush1.msra.mxu0 %v1862
  %1881 = vmatprep.subr.mxu0 0.0
  %1882 = vmatpush1.msra.mxu0 %v1863
  %1883 = vmatprep.subr.mxu0 0.0
  %1884 = vmatpush1.msra.mxu0 %v1864
  %1885 = vmatprep.subr.mxu0 0.0
  %1886 = vmatpush1.msra.mxu0 0.0
  %1887 = vmatprep.subr.mxu0 0.0
  %1888 = vmatpush1.msra.mxu0 0.0
  %1889 = vmatprep.subr.mxu0 0.0
  %1890 = vmatpush1.msra.mxu0 0.0
  %1891 = vmatprep.subr.mxu0 0.0
  %1892 = vmatpush1.msra.mxu0 0.0
  %1893 = vmatprep.subr.mxu0 0.0
  %1894 = vmatpush1.msra.mxu0 0.0
  %1895 = vmatprep.subr.mxu0 0.0
  %1896 = vmatpush1.msra.mxu0 0.0
  %1897 = vmatprep.subr.mxu0 0.0
  %1898 = vmatpush1.msra.mxu0 0.0
  %1899 = vmatprep.subr.mxu0 0.0
  %1900 = vmatpush1.msra.mxu0 0.0
  %1901 = vmatprep.subr.mxu0 0.0
  %1902 = vmatpush1.msra.mxu0 0.0
  %1903 = vmatprep.subr.mxu0 0.0
  %1904 = vmatpush1.msra.mxu0 0.0
  %1905 = vmatprep.subr.mxu0 0.0
  %1906 = vmatpush1.msra.mxu0 0.0
  %1907 = vmatprep.subr.mxu0 0.0
  %1908 = vmatpush1.msra.mxu0 0.0
  %1909 = vmatprep.subr.mxu0 0.0
  %1910 = vmatpush1.msra.mxu0 0.0
  %1911 = vmatprep.subr.mxu0 0.0
  %1912 = vmatpush1.msra.mxu0 0.0
  %1913 = vmatprep.subr.mxu0 0.0
  %1914 = vmatpush1.msra.mxu0 0.0
  %1915 = vmatprep.subr.mxu0 0.0
  %1916 = vmatpush1.msra.mxu0 0.0
  %1917 = vmatprep.subr.mxu0 0.0
  %1918 = vmatpush1.msra.mxu0 0.0
  %1919 = vmatprep.subr.mxu0 0.0
  %1920 = vmatpush1.msra.mxu0 0.0
  %1921 = vmatprep.subr.mxu0 0.0
  %1922 = vmatpush1.msra.mxu0 0.0
  %1923 = vmatprep.subr.mxu0 0.0
  %1924 = vmatpush1.msra.mxu0 0.0
  %1925 = vmatprep.subr.mxu0 0.0
  %1926 = vmatpush1.msra.mxu0 0.0
  %1927 = vmatprep.subr.mxu0 0.0
  %1928 = vmatpush1.msra.mxu0 0.0
  %1929 = vmatprep.subr.mxu0 0.0
  %1930 = vmatpush1.msra.mxu0 0.0
  %1931 = vmatprep.subr.mxu0 0.0
  %1932 = vmatpush1.msra.mxu0 0.0
  %1933 = vmatprep.mubr.f32.mxu0 0.0
  %1934 = vmatmul.mubr.f32.gmra.mrb[0].mxu0 %v1867
  %v1935 = vpop.f32.mrb[0].mxu0
  %v1936 = vadd.f32 %v1865, %v1935
  %v1937 = vpop.f32.mrb[0].mxu0
  %1938 = vdwg.mxu0
  %v1939 = vmax.f32 %v1936, 0.0
  %v1940 = vld [vmem:[%s5 + $0x10] ss:$0 sm:$0xff]
  %v1941 = vmul.f32 %v1939, %v1940
  %v1942 = vsel %vm1752, %v1941, 0.0
  %1943 = vadd.xlane.f32.xlu0 %v1942
  %v1944 = vpop.xlane.xlu0 %1943
  %v1945 = vld [vmem:[%s5 + $0x11] ss:$0 sm:$0xff]
  %v1946 = vadd.f32 %v1944, %v1945
  %vm1947 = vcmask 1024
  %1948 = vst.msk [vmem:[%s7] sm:$0x3] %vm1947, %v1946
  // Predicated region
  $region30: #{model_wrapper_forward.1} parent=0 // pred_check
    _
  $region31: #{model_wrapper_forward.1} parent=0 // pred_check_branch
    %1950 = sbr.rel (0) target = $region33
  $region32: #{model_wrapper_forward.1} parent=0 // pred_region
    _
  $region33: #{model_wrapper_forward.1} parent=0 // pred_fallthru
    _
  // Predicated region
  $region34: #{model_wrapper_forward.1} parent=0 // pred_check
    _
  $region35: #{model_wrapper_forward.1} parent=0 // pred_check_branch
    %1952 = sbr.rel (0) target = $region37
  $region36: #{model_wrapper_forward.1} parent=0 // pred_region
    _
  $region37: #{model_wrapper_forward.1} parent=0 // pred_fallthru
    _

</llo_original>
